<compile_context>
chip_gen: v5e
topology: v5e:2x2
jax: 0.10.0
libtpu: 0.0.40
codegen_flags: <defaults>
</compile_context>

<pallas_src>
import functools

import jax
import jax.numpy as jnp
from jax import lax
from jax.experimental import pallas as pl
from jax.experimental.pallas import tpu as pltpu


# tap t = (dh+1)*3 + (dw+1)  ==  kh*3 + kw of the OIHW weight
_TAPS = tuple((dh, dw) for dh in (-1, 0, 1) for dw in (-1, 0, 1))


def _bridge_kernel(x_ref, m_ref, w1_ref, g1_ref, be1_ref,
                   w2_ref, g2_ref, be2_ref, out_ref, *, W):
    """Fused Bridge forward.

    x_ref   : (N, Cin, H*W)   f32   NCHW input, spatial flattened (lane dense)
    m_ref   : (9, 1, N*H*W)   f32   0/1 tap-validity masks (shared by both convs)
    w*_ref  : (9, Cout, Cin)  bf16  per-tap conv weights
    g*/be*  : (C, 1)          f32   BN gamma / beta
    out_ref : (N, Cout, H*W)  f32   NCHW output, spatial flattened
    """
    N, _, HW = x_ref.shape
    P = N * HW
    eps = 1e-5
    inv_p = 1.0 / P

    def conv3x3(img, w_ref):
        # img: (C, P) f32, register resident.  Each tap is one XLU roll of the
        # whole image; lanes whose shift crosses a row/image boundary are
        # zeroed by one vmul with the 0/1 mask (exact zero padding).  The MXU
        # operands are cast to bf16 (f32 accumulation via preferred_element_type).
        acc = None
        for t, (dh, dw) in enumerate(_TAPS):
            s = dh * W + dw                       # constant flat shift of this tap
            if s == 0:
                tap = img                         # center tap: always valid
            else:
                tap = pltpu.roll(img, shift=(-s) % P, axis=1)
                tap = tap * m_ref[t]              # (C,P) * (1,P) 0/1 mask
            part = jnp.dot(w_ref[t], tap.astype(jnp.bfloat16),
                           preferred_element_type=jnp.float32)
            acc = part if acc is None else acc + part
        return acc                                # (Cout, P) f32

    def bn_relu(acc, g_ref, be_ref):
        # One-pass training-mode BN (biased variance) + folded affine + ReLU,
        # all in f32.  The Conv2d bias is omitted because
        # (acc + b) - mean(acc + b) == acc - mean(acc)  (it cancels exactly).
        ssum = jnp.sum(acc, axis=1, keepdims=True)          # (C, 1)
        ssq = jnp.sum(acc * acc, axis=1, keepdims=True)     # (C, 1)
        mean = ssum * inv_p
        var = ssq * inv_p - mean * mean
        scale = g_ref[...] * lax.rsqrt(var + eps)           # rsqrt on EUP
        shift = be_ref[...] - mean * scale
        return jnp.maximum(acc * scale + shift, 0.0)

    # ---------------- ConvBlock 1: conv3x3 -> BN -> ReLU --------------------
    # lane-concat of the per-batch images (HW is 128-aligned -> free)
    img1 = jnp.concatenate([x_ref[n] for n in range(N)], axis=-1)   # (Cin, P)
    y1 = bn_relu(conv3x3(img1, w1_ref), g1_ref, be1_ref)            # (Cmid, P)

    # ---------------- ConvBlock 2: conv3x3 -> BN -> ReLU --------------------
    # y1 stays in vregs; no staging through VMEM.
    z = bn_relu(conv3x3(y1, w2_ref), g2_ref, be2_ref)               # (Cout, P)

    for n in range(N):                            # lane-dense NCHW stores
        out_ref[n] = z[:, n * HW:(n + 1) * HW]


def bridge_forward(x_nchw, params):
    """Pallas implementation of Bridge.forward.  x_nchw: (N, Cin, H, W) f32."""
    w1, b1, g1, be1, w2, b2, g2, be2 = params      # w*: OIHW (PyTorch layout)
    del b1, b2                                     # cancel exactly under training-mode BN
    N, Cin, H, W = x_nchw.shape
    Cmid, Cout = w1.shape[0], w2.shape[0]
    HW = H * W
    P = N * HW

    # Glue: free trailing reshape of x; tiny weight / mask prep only.
    x_flat = x_nchw.reshape(N, Cin, HW)
    # w[co, ci, kh, kw] -> w_t[t, co, ci] with t = kh*3 + kw, in bf16 (MXU-native).
    w1t = jnp.transpose(w1, (2, 3, 0, 1)).reshape(9, Cmid, Cin).astype(jnp.bfloat16)
    w2t = jnp.transpose(w2, (2, 3, 0, 1)).reshape(9, Cout, Cmid).astype(jnp.bfloat16)

    # Tap-validity masks, identical for both convs: mask[t, 0, n*HW+h*W+w] = 1
    # iff (h+dh, w+dw) lies inside the image for tap t = (dh+1)*3 + (dw+1).
    # They also zero every lane whose circular roll wraps a row / batch image.
    p = jnp.arange(P, dtype=jnp.int32)
    hh = (p // W) % H
    ww = p % W
    masks = []
    for dh in (-1, 0, 1):
        for dw in (-1, 0, 1):
            masks.append((hh + dh >= 0) & (hh + dh < H) &
                         (ww + dw >= 0) & (ww + dw < W))
    masks = jnp.stack(masks).astype(jnp.float32).reshape(9, 1, P)

    vmem = pl.BlockSpec(memory_space=pltpu.MemorySpace.VMEM)
    kernel = functools.partial(_bridge_kernel, W=W)
    out_flat = pl.pallas_call(
        kernel,
        out_shape=jax.ShapeDtypeStruct((N, Cout, HW), jnp.float32),
        in_specs=[vmem] * 8,
        out_specs=vmem,
        # no scratch_shapes: everything is register / input resident
    )(x_flat, masks, w1t, g1.reshape(-1, 1), be1.reshape(-1, 1),
      w2t, g2.reshape(-1, 1), be2.reshape(-1, 1))

    return out_flat.reshape(N, Cout, H, W)         # free trailing reshape


# ---------------------------- reference (pure JAX) --------------------------
def _conv_block_ref(x, w_oihw, b, gamma, beta, *, conv_dtype=jnp.float32):
    y = lax.conv_general_dilated(
        x.astype(conv_dtype), w_oihw.astype(conv_dtype),
        window_strides=(1, 1), padding=((1, 1), (1, 1)),
        dimension_numbers=("NCHW", "OIHW", "NCHW"),
        preferred_element_type=jnp.float32,
        precision=lax.Precision.HIGHEST)
    y = y + b[None, :, None, None]
    mean = jnp.mean(y, axis=(0, 2, 3), keepdims=True)
    var = jnp.mean((y - mean) ** 2, axis=(0, 2, 3), keepdims=True)
    y = (y - mean) * lax.rsqrt(var + 1e-5)
    y = y * gamma[None, :, None, None] + beta[None, :, None, None]
    return jnp.maximum(y, 0.0)


def bridge_ref(x, params, conv_dtype=jnp.float32):
    w1, b1, g1, be1, w2, b2, g2, be2 = params
    y = _conv_block_ref(x, w1, b1, g1, be1, conv_dtype=conv_dtype)
    return _conv_block_ref(y, w2, b2, g2, be2, conv_dtype=conv_dtype)


# ---------------------------- parameter init --------------------------------
def init_params(key, cin, cout):
    ks = jax.random.split(key, 8)
    w1 = jax.random.normal(ks[0], (cout, cin, 3, 3), jnp.float32) / (9 * cin) ** 0.5
    b1 = 0.1 * jax.random.normal(ks[1], (cout,), jnp.float32)
    g1 = 1.0 + 0.1 * jax.random.normal(ks[2], (cout,), jnp.float32)
    be1 = 0.1 * jax.random.normal(ks[3], (cout,), jnp.float32)
    w2 = jax.random.normal(ks[4], (cout, cout, 3, 3), jnp.float32) / (9 * cout) ** 0.5
    b2 = 0.1 * jax.random.normal(ks[5], (cout,), jnp.float32)
    g2 = 1.0 + 0.1 * jax.random.normal(ks[6], (cout,), jnp.float32)
    be2 = 0.1 * jax.random.normal(ks[7], (cout,), jnp.float32)
    return (w1, b1, g1, be1, w2, b2, g2, be2)


if __name__ == "__main__":
    key = jax.random.PRNGKey(0)
    kx, kp = jax.random.split(key)

    N, Cin, Cout, H, W = 2, 8, 16, 16, 16
    x = jax.random.normal(kx, (N, Cin, H, W), jnp.float32)
    params = init_params(kp, Cin, Cout)

    out = jax.block_until_ready(bridge_forward(x, params))
    assert out.shape == (N, Cout, H, W), out.shape

    # Tight check against a reference that uses the same bf16 MXU operands
    # (validates the roll / mask / per-tap matmul / BN logic itself).
    ref_bf16 = bridge_ref(x, params, conv_dtype=jnp.bfloat16)
    err_logic = float(jnp.max(jnp.abs(out - ref_bf16)))
    assert err_logic < 5e-3, f"logic max |err| = {err_logic}"

    # Looser check against exact f32 module semantics: the only deviation is
    # the bf16 rounding of the conv operands (f32 accumulation, f32 BN).
    ref_f32 = bridge_ref(x, params, conv_dtype=jnp.float32)
    err_f32 = float(jnp.max(jnp.abs(out - ref_f32)))
    assert err_f32 < 5e-2, f"f32 max |err| = {err_f32}"

    print("KERNEL_OK")
</pallas_src>

<mosaic_0001>
module attributes {stable_mosaic.version = 11 : i64} {
  func.func @_bridge_kernel(%arg0: memref<2x8x256xf32, #tpu.memory_space<vmem>>, %arg1: memref<9x1x512xf32, #tpu.memory_space<vmem>>, %arg2: memref<9x16x8xbf16, #tpu.memory_space<vmem>>, %arg3: memref<16x1xf32, #tpu.memory_space<vmem>>, %arg4: memref<16x1xf32, #tpu.memory_space<vmem>>, %arg5: memref<9x16x16xbf16, #tpu.memory_space<vmem>>, %arg6: memref<16x1xf32, #tpu.memory_space<vmem>>, %arg7: memref<16x1xf32, #tpu.memory_space<vmem>>, %arg8: memref<2x16x256xf32, #tpu.memory_space<vmem>>) attributes {dimension_semantics = [], scalar_prefetch = 0 : i64, scratch_operands = 0 : i64, tpu.core_type = #tpu.core_type<tc>} {
    %c0 = arith.constant 0 : index
    %c0_0 = arith.constant 0 : index
    %c0_1 = arith.constant 0 : index
    %0 = vector.load %arg0[%c0, %c0_0, %c0_1] : memref<2x8x256xf32, #tpu.memory_space<vmem>>, vector<1x8x256xf32>
    %1 = vector.shape_cast %0 : vector<1x8x256xf32> to vector<8x256xf32>
    %c1 = arith.constant 1 : index
    %c0_2 = arith.constant 0 : index
    %c0_3 = arith.constant 0 : index
    %2 = vector.load %arg0[%c1, %c0_2, %c0_3] : memref<2x8x256xf32, #tpu.memory_space<vmem>>, vector<1x8x256xf32>
    %3 = vector.shape_cast %2 : vector<1x8x256xf32> to vector<8x256xf32>
    %4 = tpu.concatenate %1, %3 in 1 : vector<8x256xf32>, vector<8x256xf32> -> vector<8x512xf32>
    %c17_i32 = arith.constant 17 : i32
    %5 = tpu.dynamic_rotate %4 by %c17_i32 dim 1 : vector<8x512xf32>, i32 -> vector<8x512xf32>
    %c0_4 = arith.constant 0 : index
    %c0_5 = arith.constant 0 : index
    %c0_6 = arith.constant 0 : index
    %6 = vector.load %arg1[%c0_4, %c0_5, %c0_6] : memref<9x1x512xf32, #tpu.memory_space<vmem>>, vector<1x1x512xf32>
    %7 = vector.shape_cast %6 : vector<1x1x512xf32> to vector<1x512xf32>
    %8 = vector.broadcast %7 : vector<1x512xf32> to vector<8x512xf32>
    %9 = arith.mulf %5, %8 : vector<8x512xf32>
    %c0_7 = arith.constant 0 : index
    %c0_8 = arith.constant 0 : index
    %c0_9 = arith.constant 0 : index
    %10 = vector.load %arg2[%c0_7, %c0_8, %c0_9] : memref<9x16x8xbf16, #tpu.memory_space<vmem>>, vector<1x16x8xbf16>
    %11 = vector.shape_cast %10 : vector<1x16x8xbf16> to vector<16x8xbf16>
    %12 = arith.truncf %9 : vector<8x512xf32> to vector<8x512xbf16>
    %cst = arith.constant dense<0.000000e+00> : vector<16x512xf32>
    %13 = tpu.matmul %11, %12, %cst {dimension_numbers = #tpu.dot_dimension_numbers<[1], [0], [0], [1], [0, 0, 1, 1], [], []>} : vector<16x8xbf16>, vector<8x512xbf16>, vector<16x512xf32> -> vector<16x512xf32>
    %c16_i32 = arith.constant 16 : i32
    %14 = tpu.dynamic_rotate %4 by %c16_i32 dim 1 : vector<8x512xf32>, i32 -> vector<8x512xf32>
    %c1_10 = arith.constant 1 : index
    %c0_11 = arith.constant 0 : index
    %c0_12 = arith.constant 0 : index
    %15 = vector.load %arg1[%c1_10, %c0_11, %c0_12] : memref<9x1x512xf32, #tpu.memory_space<vmem>>, vector<1x1x512xf32>
    %16 = vector.shape_cast %15 : vector<1x1x512xf32> to vector<1x512xf32>
    %17 = vector.broadcast %16 : vector<1x512xf32> to vector<8x512xf32>
    %18 = arith.mulf %14, %17 : vector<8x512xf32>
    %c1_13 = arith.constant 1 : index
    %c0_14 = arith.constant 0 : index
    %c0_15 = arith.constant 0 : index
    %19 = vector.load %arg2[%c1_13, %c0_14, %c0_15] : memref<9x16x8xbf16, #tpu.memory_space<vmem>>, vector<1x16x8xbf16>
    %20 = vector.shape_cast %19 : vector<1x16x8xbf16> to vector<16x8xbf16>
    %21 = arith.truncf %18 : vector<8x512xf32> to vector<8x512xbf16>
    %cst_16 = arith.constant dense<0.000000e+00> : vector<16x512xf32>
    %22 = tpu.matmul %20, %21, %cst_16 {dimension_numbers = #tpu.dot_dimension_numbers<[1], [0], [0], [1], [0, 0, 1, 1], [], []>} : vector<16x8xbf16>, vector<8x512xbf16>, vector<16x512xf32> -> vector<16x512xf32>
    %23 = arith.addf %13, %22 : vector<16x512xf32>
    %c15_i32 = arith.constant 15 : i32
    %24 = tpu.dynamic_rotate %4 by %c15_i32 dim 1 : vector<8x512xf32>, i32 -> vector<8x512xf32>
    %c2 = arith.constant 2 : index
    %c0_17 = arith.constant 0 : index
    %c0_18 = arith.constant 0 : index
    %25 = vector.load %arg1[%c2, %c0_17, %c0_18] : memref<9x1x512xf32, #tpu.memory_space<vmem>>, vector<1x1x512xf32>
    %26 = vector.shape_cast %25 : vector<1x1x512xf32> to vector<1x512xf32>
    %27 = vector.broadcast %26 : vector<1x512xf32> to vector<8x512xf32>
    %28 = arith.mulf %24, %27 : vector<8x512xf32>
    %c2_19 = arith.constant 2 : index
    %c0_20 = arith.constant 0 : index
    %c0_21 = arith.constant 0 : index
    %29 = vector.load %arg2[%c2_19, %c0_20, %c0_21] : memref<9x16x8xbf16, #tpu.memory_space<vmem>>, vector<1x16x8xbf16>
    %30 = vector.shape_cast %29 : vector<1x16x8xbf16> to vector<16x8xbf16>
    %31 = arith.truncf %28 : vector<8x512xf32> to vector<8x512xbf16>
    %cst_22 = arith.constant dense<0.000000e+00> : vector<16x512xf32>
    %32 = tpu.matmul %30, %31, %cst_22 {dimension_numbers = #tpu.dot_dimension_numbers<[1], [0], [0], [1], [0, 0, 1, 1], [], []>} : vector<16x8xbf16>, vector<8x512xbf16>, vector<16x512xf32> -> vector<16x512xf32>
    %33 = arith.addf %23, %32 : vector<16x512xf32>
    %c1_i32 = arith.constant 1 : i32
    %34 = tpu.dynamic_rotate %4 by %c1_i32 dim 1 : vector<8x512xf32>, i32 -> vector<8x512xf32>
    %c3 = arith.constant 3 : index
    %c0_23 = arith.constant 0 : index
    %c0_24 = arith.constant 0 : index
    %35 = vector.load %arg1[%c3, %c0_23, %c0_24] : memref<9x1x512xf32, #tpu.memory_space<vmem>>, vector<1x1x512xf32>
    %36 = vector.shape_cast %35 : vector<1x1x512xf32> to vector<1x512xf32>
    %37 = vector.broadcast %36 : vector<1x512xf32> to vector<8x512xf32>
    %38 = arith.mulf %34, %37 : vector<8x512xf32>
    %c3_25 = arith.constant 3 : index
    %c0_26 = arith.constant 0 : index
    %c0_27 = arith.constant 0 : index
    %39 = vector.load %arg2[%c3_25, %c0_26, %c0_27] : memref<9x16x8xbf16, #tpu.memory_space<vmem>>, vector<1x16x8xbf16>
    %40 = vector.shape_cast %39 : vector<1x16x8xbf16> to vector<16x8xbf16>
    %41 = arith.truncf %38 : vector<8x512xf32> to vector<8x512xbf16>
    %cst_28 = arith.constant dense<0.000000e+00> : vector<16x512xf32>
    %42 = tpu.matmul %40, %41, %cst_28 {dimension_numbers = #tpu.dot_dimension_numbers<[1], [0], [0], [1], [0, 0, 1, 1], [], []>} : vector<16x8xbf16>, vector<8x512xbf16>, vector<16x512xf32> -> vector<16x512xf32>
    %43 = arith.addf %33, %42 : vector<16x512xf32>
    %c4 = arith.constant 4 : index
    %c0_29 = arith.constant 0 : index
    %c0_30 = arith.constant 0 : index
    %44 = vector.load %arg2[%c4, %c0_29, %c0_30] : memref<9x16x8xbf16, #tpu.memory_space<vmem>>, vector<1x16x8xbf16>
    %45 = vector.shape_cast %44 : vector<1x16x8xbf16> to vector<16x8xbf16>
    %46 = arith.truncf %4 : vector<8x512xf32> to vector<8x512xbf16>
    %cst_31 = arith.constant dense<0.000000e+00> : vector<16x512xf32>
    %47 = tpu.matmul %45, %46, %cst_31 {dimension_numbers = #tpu.dot_dimension_numbers<[1], [0], [0], [1], [0, 0, 1, 1], [], []>} : vector<16x8xbf16>, vector<8x512xbf16>, vector<16x512xf32> -> vector<16x512xf32>
    %48 = arith.addf %43, %47 : vector<16x512xf32>
    %c511_i32 = arith.constant 511 : i32
    %49 = tpu.dynamic_rotate %4 by %c511_i32 dim 1 : vector<8x512xf32>, i32 -> vector<8x512xf32>
    %c5 = arith.constant 5 : index
    %c0_32 = arith.constant 0 : index
    %c0_33 = arith.constant 0 : index
    %50 = vector.load %arg1[%c5, %c0_32, %c0_33] : memref<9x1x512xf32, #tpu.memory_space<vmem>>, vector<1x1x512xf32>
    %51 = vector.shape_cast %50 : vector<1x1x512xf32> to vector<1x512xf32>
    %52 = vector.broadcast %51 : vector<1x512xf32> to vector<8x512xf32>
    %53 = arith.mulf %49, %52 : vector<8x512xf32>
    %c5_34 = arith.constant 5 : index
    %c0_35 = arith.constant 0 : index
    %c0_36 = arith.constant 0 : index
    %54 = vector.load %arg2[%c5_34, %c0_35, %c0_36] : memref<9x16x8xbf16, #tpu.memory_space<vmem>>, vector<1x16x8xbf16>
    %55 = vector.shape_cast %54 : vector<1x16x8xbf16> to vector<16x8xbf16>
    %56 = arith.truncf %53 : vector<8x512xf32> to vector<8x512xbf16>
    %cst_37 = arith.constant dense<0.000000e+00> : vector<16x512xf32>
    %57 = tpu.matmul %55, %56, %cst_37 {dimension_numbers = #tpu.dot_dimension_numbers<[1], [0], [0], [1], [0, 0, 1, 1], [], []>} : vector<16x8xbf16>, vector<8x512xbf16>, vector<16x512xf32> -> vector<16x512xf32>
    %58 = arith.addf %48, %57 : vector<16x512xf32>
    %c497_i32 = arith.constant 497 : i32
    %59 = tpu.dynamic_rotate %4 by %c497_i32 dim 1 : vector<8x512xf32>, i32 -> vector<8x512xf32>
    %c6 = arith.constant 6 : index
    %c0_38 = arith.constant 0 : index
    %c0_39 = arith.constant 0 : index
    %60 = vector.load %arg1[%c6, %c0_38, %c0_39] : memref<9x1x512xf32, #tpu.memory_space<vmem>>, vector<1x1x512xf32>
    %61 = vector.shape_cast %60 : vector<1x1x512xf32> to vector<1x512xf32>
    %62 = vector.broadcast %61 : vector<1x512xf32> to vector<8x512xf32>
    %63 = arith.mulf %59, %62 : vector<8x512xf32>
    %c6_40 = arith.constant 6 : index
    %c0_41 = arith.constant 0 : index
    %c0_42 = arith.constant 0 : index
    %64 = vector.load %arg2[%c6_40, %c0_41, %c0_42] : memref<9x16x8xbf16, #tpu.memory_space<vmem>>, vector<1x16x8xbf16>
    %65 = vector.shape_cast %64 : vector<1x16x8xbf16> to vector<16x8xbf16>
    %66 = arith.truncf %63 : vector<8x512xf32> to vector<8x512xbf16>
    %cst_43 = arith.constant dense<0.000000e+00> : vector<16x512xf32>
    %67 = tpu.matmul %65, %66, %cst_43 {dimension_numbers = #tpu.dot_dimension_numbers<[1], [0], [0], [1], [0, 0, 1, 1], [], []>} : vector<16x8xbf16>, vector<8x512xbf16>, vector<16x512xf32> -> vector<16x512xf32>
    %68 = arith.addf %58, %67 : vector<16x512xf32>
    %c496_i32 = arith.constant 496 : i32
    %69 = tpu.dynamic_rotate %4 by %c496_i32 dim 1 : vector<8x512xf32>, i32 -> vector<8x512xf32>
    %c7 = arith.constant 7 : index
    %c0_44 = arith.constant 0 : index
    %c0_45 = arith.constant 0 : index
    %70 = vector.load %arg1[%c7, %c0_44, %c0_45] : memref<9x1x512xf32, #tpu.memory_space<vmem>>, vector<1x1x512xf32>
    %71 = vector.shape_cast %70 : vector<1x1x512xf32> to vector<1x512xf32>
    %72 = vector.broadcast %71 : vector<1x512xf32> to vector<8x512xf32>
    %73 = arith.mulf %69, %72 : vector<8x512xf32>
    %c7_46 = arith.constant 7 : index
    %c0_47 = arith.constant 0 : index
    %c0_48 = arith.constant 0 : index
    %74 = vector.load %arg2[%c7_46, %c0_47, %c0_48] : memref<9x16x8xbf16, #tpu.memory_space<vmem>>, vector<1x16x8xbf16>
    %75 = vector.shape_cast %74 : vector<1x16x8xbf16> to vector<16x8xbf16>
    %76 = arith.truncf %73 : vector<8x512xf32> to vector<8x512xbf16>
    %cst_49 = arith.constant dense<0.000000e+00> : vector<16x512xf32>
    %77 = tpu.matmul %75, %76, %cst_49 {dimension_numbers = #tpu.dot_dimension_numbers<[1], [0], [0], [1], [0, 0, 1, 1], [], []>} : vector<16x8xbf16>, vector<8x512xbf16>, vector<16x512xf32> -> vector<16x512xf32>
    %78 = arith.addf %68, %77 : vector<16x512xf32>
    %c495_i32 = arith.constant 495 : i32
    %79 = tpu.dynamic_rotate %4 by %c495_i32 dim 1 : vector<8x512xf32>, i32 -> vector<8x512xf32>
    %c8 = arith.constant 8 : index
    %c0_50 = arith.constant 0 : index
    %c0_51 = arith.constant 0 : index
    %80 = vector.load %arg1[%c8, %c0_50, %c0_51] : memref<9x1x512xf32, #tpu.memory_space<vmem>>, vector<1x1x512xf32>
    %81 = vector.shape_cast %80 : vector<1x1x512xf32> to vector<1x512xf32>
    %82 = vector.broadcast %81 : vector<1x512xf32> to vector<8x512xf32>
    %83 = arith.mulf %79, %82 : vector<8x512xf32>
    %c8_52 = arith.constant 8 : index
    %c0_53 = arith.constant 0 : index
    %c0_54 = arith.constant 0 : index
    %84 = vector.load %arg2[%c8_52, %c0_53, %c0_54] : memref<9x16x8xbf16, #tpu.memory_space<vmem>>, vector<1x16x8xbf16>
    %85 = vector.shape_cast %84 : vector<1x16x8xbf16> to vector<16x8xbf16>
    %86 = arith.truncf %83 : vector<8x512xf32> to vector<8x512xbf16>
    %cst_55 = arith.constant dense<0.000000e+00> : vector<16x512xf32>
    %87 = tpu.matmul %85, %86, %cst_55 {dimension_numbers = #tpu.dot_dimension_numbers<[1], [0], [0], [1], [0, 0, 1, 1], [], []>} : vector<16x8xbf16>, vector<8x512xbf16>, vector<16x512xf32> -> vector<16x512xf32>
    %88 = arith.addf %78, %87 : vector<16x512xf32>
    %cst_56 = arith.constant dense<0.000000e+00> : vector<16xf32>
    %89 = vector.multi_reduction <add>, %88, %cst_56 [1] : vector<16x512xf32> to vector<16xf32>
    %90 = vector.shape_cast %89 : vector<16xf32> to vector<16x1xf32>
    %91 = arith.mulf %88, %88 : vector<16x512xf32>
    %cst_57 = arith.constant dense<0.000000e+00> : vector<16xf32>
    %92 = vector.multi_reduction <add>, %91, %cst_57 [1] : vector<16x512xf32> to vector<16xf32>
    %93 = vector.shape_cast %92 : vector<16xf32> to vector<16x1xf32>
    %cst_58 = arith.constant 0.001953125 : f32
    %94 = vector.broadcast %cst_58 : f32 to vector<16x1xf32>
    %95 = arith.mulf %90, %94 : vector<16x1xf32>
    %cst_59 = arith.constant 0.001953125 : f32
    %96 = vector.broadcast %cst_59 : f32 to vector<16x1xf32>
    %97 = arith.mulf %93, %96 : vector<16x1xf32>
    %98 = arith.mulf %95, %95 : vector<16x1xf32>
    %99 = arith.subf %97, %98 : vector<16x1xf32>
    %c0_60 = arith.constant 0 : index
    %c0_61 = arith.constant 0 : index
    %100 = vector.load %arg3[%c0_60, %c0_61] : memref<16x1xf32, #tpu.memory_space<vmem>>, vector<16x1xf32>
    %cst_62 = arith.constant 9.99999974E-6 : f32
    %101 = vector.broadcast %cst_62 : f32 to vector<16x1xf32>
    %102 = arith.addf %99, %101 : vector<16x1xf32>
    %103 = math.rsqrt %102 : vector<16x1xf32>
    %104 = arith.mulf %100, %103 : vector<16x1xf32>
    %c0_63 = arith.constant 0 : index
    %c0_64 = arith.constant 0 : index
    %105 = vector.load %arg4[%c0_63, %c0_64] : memref<16x1xf32, #tpu.memory_space<vmem>>, vector<16x1xf32>
    %106 = arith.mulf %95, %104 : vector<16x1xf32>
    %107 = arith.subf %105, %106 : vector<16x1xf32>
    %108 = vector.broadcast %104 : vector<16x1xf32> to vector<16x512xf32>
    %109 = arith.mulf %88, %108 : vector<16x512xf32>
    %110 = vector.broadcast %107 : vector<16x1xf32> to vector<16x512xf32>
    %111 = arith.addf %109, %110 : vector<16x512xf32>
    %cst_65 = arith.constant 0.000000e+00 : f32
    %112 = vector.broadcast %cst_65 : f32 to vector<16x512xf32>
    %113 = arith.maximumf %111, %112 : vector<16x512xf32>
    %c17_i32_66 = arith.constant 17 : i32
    %114 = tpu.dynamic_rotate %113 by %c17_i32_66 dim 1 : vector<16x512xf32>, i32 -> vector<16x512xf32>
    %c0_67 = arith.constant 0 : index
    %c0_68 = arith.constant 0 : index
    %c0_69 = arith.constant 0 : index
    %115 = vector.load %arg1[%c0_67, %c0_68, %c0_69] : memref<9x1x512xf32, #tpu.memory_space<vmem>>, vector<1x1x512xf32>
    %116 = vector.shape_cast %115 : vector<1x1x512xf32> to vector<1x512xf32>
    %117 = vector.broadcast %116 : vector<1x512xf32> to vector<16x512xf32>
    %118 = arith.mulf %114, %117 : vector<16x512xf32>
    %c0_70 = arith.constant 0 : index
    %c0_71 = arith.constant 0 : index
    %c0_72 = arith.constant 0 : index
    %119 = vector.load %arg5[%c0_70, %c0_71, %c0_72] : memref<9x16x16xbf16, #tpu.memory_space<vmem>>, vector<1x16x16xbf16>
    %120 = vector.shape_cast %119 : vector<1x16x16xbf16> to vector<16x16xbf16>
    %121 = arith.truncf %118 : vector<16x512xf32> to vector<16x512xbf16>
    %cst_73 = arith.constant dense<0.000000e+00> : vector<16x512xf32>
    %122 = tpu.matmul %120, %121, %cst_73 {dimension_numbers = #tpu.dot_dimension_numbers<[1], [0], [0], [1], [0, 0, 1, 1], [], []>} : vector<16x16xbf16>, vector<16x512xbf16>, vector<16x512xf32> -> vector<16x512xf32>
    %c16_i32_74 = arith.constant 16 : i32
    %123 = tpu.dynamic_rotate %113 by %c16_i32_74 dim 1 : vector<16x512xf32>, i32 -> vector<16x512xf32>
    %c1_75 = arith.constant 1 : index
    %c0_76 = arith.constant 0 : index
    %c0_77 = arith.constant 0 : index
    %124 = vector.load %arg1[%c1_75, %c0_76, %c0_77] : memref<9x1x512xf32, #tpu.memory_space<vmem>>, vector<1x1x512xf32>
    %125 = vector.shape_cast %124 : vector<1x1x512xf32> to vector<1x512xf32>
    %126 = vector.broadcast %125 : vector<1x512xf32> to vector<16x512xf32>
    %127 = arith.mulf %123, %126 : vector<16x512xf32>
    %c1_78 = arith.constant 1 : index
    %c0_79 = arith.constant 0 : index
    %c0_80 = arith.constant 0 : index
    %128 = vector.load %arg5[%c1_78, %c0_79, %c0_80] : memref<9x16x16xbf16, #tpu.memory_space<vmem>>, vector<1x16x16xbf16>
    %129 = vector.shape_cast %128 : vector<1x16x16xbf16> to vector<16x16xbf16>
    %130 = arith.truncf %127 : vector<16x512xf32> to vector<16x512xbf16>
    %cst_81 = arith.constant dense<0.000000e+00> : vector<16x512xf32>
    %131 = tpu.matmul %129, %130, %cst_81 {dimension_numbers = #tpu.dot_dimension_numbers<[1], [0], [0], [1], [0, 0, 1, 1], [], []>} : vector<16x16xbf16>, vector<16x512xbf16>, vector<16x512xf32> -> vector<16x512xf32>
    %132 = arith.addf %122, %131 : vector<16x512xf32>
    %c15_i32_82 = arith.constant 15 : i32
    %133 = tpu.dynamic_rotate %113 by %c15_i32_82 dim 1 : vector<16x512xf32>, i32 -> vector<16x512xf32>
    %c2_83 = arith.constant 2 : index
    %c0_84 = arith.constant 0 : index
    %c0_85 = arith.constant 0 : index
    %134 = vector.load %arg1[%c2_83, %c0_84, %c0_85] : memref<9x1x512xf32, #tpu.memory_space<vmem>>, vector<1x1x512xf32>
    %135 = vector.shape_cast %134 : vector<1x1x512xf32> to vector<1x512xf32>
    %136 = vector.broadcast %135 : vector<1x512xf32> to vector<16x512xf32>
    %137 = arith.mulf %133, %136 : vector<16x512xf32>
    %c2_86 = arith.constant 2 : index
    %c0_87 = arith.constant 0 : index
    %c0_88 = arith.constant 0 : index
    %138 = vector.load %arg5[%c2_86, %c0_87, %c0_88] : memref<9x16x16xbf16, #tpu.memory_space<vmem>>, vector<1x16x16xbf16>
    %139 = vector.shape_cast %138 : vector<1x16x16xbf16> to vector<16x16xbf16>
    %140 = arith.truncf %137 : vector<16x512xf32> to vector<16x512xbf16>
    %cst_89 = arith.constant dense<0.000000e+00> : vector<16x512xf32>
    %141 = tpu.matmul %139, %140, %cst_89 {dimension_numbers = #tpu.dot_dimension_numbers<[1], [0], [0], [1], [0, 0, 1, 1], [], []>} : vector<16x16xbf16>, vector<16x512xbf16>, vector<16x512xf32> -> vector<16x512xf32>
    %142 = arith.addf %132, %141 : vector<16x512xf32>
    %c1_i32_90 = arith.constant 1 : i32
    %143 = tpu.dynamic_rotate %113 by %c1_i32_90 dim 1 : vector<16x512xf32>, i32 -> vector<16x512xf32>
    %c3_91 = arith.constant 3 : index
    %c0_92 = arith.constant 0 : index
    %c0_93 = arith.constant 0 : index
    %144 = vector.load %arg1[%c3_91, %c0_92, %c0_93] : memref<9x1x512xf32, #tpu.memory_space<vmem>>, vector<1x1x512xf32>
    %145 = vector.shape_cast %144 : vector<1x1x512xf32> to vector<1x512xf32>
    %146 = vector.broadcast %145 : vector<1x512xf32> to vector<16x512xf32>
    %147 = arith.mulf %143, %146 : vector<16x512xf32>
    %c3_94 = arith.constant 3 : index
    %c0_95 = arith.constant 0 : index
    %c0_96 = arith.constant 0 : index
    %148 = vector.load %arg5[%c3_94, %c0_95, %c0_96] : memref<9x16x16xbf16, #tpu.memory_space<vmem>>, vector<1x16x16xbf16>
    %149 = vector.shape_cast %148 : vector<1x16x16xbf16> to vector<16x16xbf16>
    %150 = arith.truncf %147 : vector<16x512xf32> to vector<16x512xbf16>
    %cst_97 = arith.constant dense<0.000000e+00> : vector<16x512xf32>
    %151 = tpu.matmul %149, %150, %cst_97 {dimension_numbers = #tpu.dot_dimension_numbers<[1], [0], [0], [1], [0, 0, 1, 1], [], []>} : vector<16x16xbf16>, vector<16x512xbf16>, vector<16x512xf32> -> vector<16x512xf32>
    %152 = arith.addf %142, %151 : vector<16x512xf32>
    %c4_98 = arith.constant 4 : index
    %c0_99 = arith.constant 0 : index
    %c0_100 = arith.constant 0 : index
    %153 = vector.load %arg5[%c4_98, %c0_99, %c0_100] : memref<9x16x16xbf16, #tpu.memory_space<vmem>>, vector<1x16x16xbf16>
    %154 = vector.shape_cast %153 : vector<1x16x16xbf16> to vector<16x16xbf16>
    %155 = arith.truncf %113 : vector<16x512xf32> to vector<16x512xbf16>
    %cst_101 = arith.constant dense<0.000000e+00> : vector<16x512xf32>
    %156 = tpu.matmul %154, %155, %cst_101 {dimension_numbers = #tpu.dot_dimension_numbers<[1], [0], [0], [1], [0, 0, 1, 1], [], []>} : vector<16x16xbf16>, vector<16x512xbf16>, vector<16x512xf32> -> vector<16x512xf32>
    %157 = arith.addf %152, %156 : vector<16x512xf32>
    %c511_i32_102 = arith.constant 511 : i32
    %158 = tpu.dynamic_rotate %113 by %c511_i32_102 dim 1 : vector<16x512xf32>, i32 -> vector<16x512xf32>
    %c5_103 = arith.constant 5 : index
    %c0_104 = arith.constant 0 : index
    %c0_105 = arith.constant 0 : index
    %159 = vector.load %arg1[%c5_103, %c0_104, %c0_105] : memref<9x1x512xf32, #tpu.memory_space<vmem>>, vector<1x1x512xf32>
    %160 = vector.shape_cast %159 : vector<1x1x512xf32> to vector<1x512xf32>
    %161 = vector.broadcast %160 : vector<1x512xf32> to vector<16x512xf32>
    %162 = arith.mulf %158, %161 : vector<16x512xf32>
    %c5_106 = arith.constant 5 : index
    %c0_107 = arith.constant 0 : index
    %c0_108 = arith.constant 0 : index
    %163 = vector.load %arg5[%c5_106, %c0_107, %c0_108] : memref<9x16x16xbf16, #tpu.memory_space<vmem>>, vector<1x16x16xbf16>
    %164 = vector.shape_cast %163 : vector<1x16x16xbf16> to vector<16x16xbf16>
    %165 = arith.truncf %162 : vector<16x512xf32> to vector<16x512xbf16>
    %cst_109 = arith.constant dense<0.000000e+00> : vector<16x512xf32>
    %166 = tpu.matmul %164, %165, %cst_109 {dimension_numbers = #tpu.dot_dimension_numbers<[1], [0], [0], [1], [0, 0, 1, 1], [], []>} : vector<16x16xbf16>, vector<16x512xbf16>, vector<16x512xf32> -> vector<16x512xf32>
    %167 = arith.addf %157, %166 : vector<16x512xf32>
    %c497_i32_110 = arith.constant 497 : i32
    %168 = tpu.dynamic_rotate %113 by %c497_i32_110 dim 1 : vector<16x512xf32>, i32 -> vector<16x512xf32>
    %c6_111 = arith.constant 6 : index
    %c0_112 = arith.constant 0 : index
    %c0_113 = arith.constant 0 : index
    %169 = vector.load %arg1[%c6_111, %c0_112, %c0_113] : memref<9x1x512xf32, #tpu.memory_space<vmem>>, vector<1x1x512xf32>
    %170 = vector.shape_cast %169 : vector<1x1x512xf32> to vector<1x512xf32>
    %171 = vector.broadcast %170 : vector<1x512xf32> to vector<16x512xf32>
    %172 = arith.mulf %168, %171 : vector<16x512xf32>
    %c6_114 = arith.constant 6 : index
    %c0_115 = arith.constant 0 : index
    %c0_116 = arith.constant 0 : index
    %173 = vector.load %arg5[%c6_114, %c0_115, %c0_116] : memref<9x16x16xbf16, #tpu.memory_space<vmem>>, vector<1x16x16xbf16>
    %174 = vector.shape_cast %173 : vector<1x16x16xbf16> to vector<16x16xbf16>
    %175 = arith.truncf %172 : vector<16x512xf32> to vector<16x512xbf16>
    %cst_117 = arith.constant dense<0.000000e+00> : vector<16x512xf32>
    %176 = tpu.matmul %174, %175, %cst_117 {dimension_numbers = #tpu.dot_dimension_numbers<[1], [0], [0], [1], [0, 0, 1, 1], [], []>} : vector<16x16xbf16>, vector<16x512xbf16>, vector<16x512xf32> -> vector<16x512xf32>
    %177 = arith.addf %167, %176 : vector<16x512xf32>
    %c496_i32_118 = arith.constant 496 : i32
    %178 = tpu.dynamic_rotate %113 by %c496_i32_118 dim 1 : vector<16x512xf32>, i32 -> vector<16x512xf32>
    %c7_119 = arith.constant 7 : index
    %c0_120 = arith.constant 0 : index
    %c0_121 = arith.constant 0 : index
    %179 = vector.load %arg1[%c7_119, %c0_120, %c0_121] : memref<9x1x512xf32, #tpu.memory_space<vmem>>, vector<1x1x512xf32>
    %180 = vector.shape_cast %179 : vector<1x1x512xf32> to vector<1x512xf32>
    %181 = vector.broadcast %180 : vector<1x512xf32> to vector<16x512xf32>
    %182 = arith.mulf %178, %181 : vector<16x512xf32>
    %c7_122 = arith.constant 7 : index
    %c0_123 = arith.constant 0 : index
    %c0_124 = arith.constant 0 : index
    %183 = vector.load %arg5[%c7_122, %c0_123, %c0_124] : memref<9x16x16xbf16, #tpu.memory_space<vmem>>, vector<1x16x16xbf16>
    %184 = vector.shape_cast %183 : vector<1x16x16xbf16> to vector<16x16xbf16>
    %185 = arith.truncf %182 : vector<16x512xf32> to vector<16x512xbf16>
    %cst_125 = arith.constant dense<0.000000e+00> : vector<16x512xf32>
    %186 = tpu.matmul %184, %185, %cst_125 {dimension_numbers = #tpu.dot_dimension_numbers<[1], [0], [0], [1], [0, 0, 1, 1], [], []>} : vector<16x16xbf16>, vector<16x512xbf16>, vector<16x512xf32> -> vector<16x512xf32>
    %187 = arith.addf %177, %186 : vector<16x512xf32>
    %c495_i32_126 = arith.constant 495 : i32
    %188 = tpu.dynamic_rotate %113 by %c495_i32_126 dim 1 : vector<16x512xf32>, i32 -> vector<16x512xf32>
    %c8_127 = arith.constant 8 : index
    %c0_128 = arith.constant 0 : index
    %c0_129 = arith.constant 0 : index
    %189 = vector.load %arg1[%c8_127, %c0_128, %c0_129] : memref<9x1x512xf32, #tpu.memory_space<vmem>>, vector<1x1x512xf32>
    %190 = vector.shape_cast %189 : vector<1x1x512xf32> to vector<1x512xf32>
    %191 = vector.broadcast %190 : vector<1x512xf32> to vector<16x512xf32>
    %192 = arith.mulf %188, %191 : vector<16x512xf32>
    %c8_130 = arith.constant 8 : index
    %c0_131 = arith.constant 0 : index
    %c0_132 = arith.constant 0 : index
    %193 = vector.load %arg5[%c8_130, %c0_131, %c0_132] : memref<9x16x16xbf16, #tpu.memory_space<vmem>>, vector<1x16x16xbf16>
    %194 = vector.shape_cast %193 : vector<1x16x16xbf16> to vector<16x16xbf16>
    %195 = arith.truncf %192 : vector<16x512xf32> to vector<16x512xbf16>
    %cst_133 = arith.constant dense<0.000000e+00> : vector<16x512xf32>
    %196 = tpu.matmul %194, %195, %cst_133 {dimension_numbers = #tpu.dot_dimension_numbers<[1], [0], [0], [1], [0, 0, 1, 1], [], []>} : vector<16x16xbf16>, vector<16x512xbf16>, vector<16x512xf32> -> vector<16x512xf32>
    %197 = arith.addf %187, %196 : vector<16x512xf32>
    %cst_134 = arith.constant dense<0.000000e+00> : vector<16xf32>
    %198 = vector.multi_reduction <add>, %197, %cst_134 [1] : vector<16x512xf32> to vector<16xf32>
    %199 = vector.shape_cast %198 : vector<16xf32> to vector<16x1xf32>
    %200 = arith.mulf %197, %197 : vector<16x512xf32>
    %cst_135 = arith.constant dense<0.000000e+00> : vector<16xf32>
    %201 = vector.multi_reduction <add>, %200, %cst_135 [1] : vector<16x512xf32> to vector<16xf32>
    %202 = vector.shape_cast %201 : vector<16xf32> to vector<16x1xf32>
    %cst_136 = arith.constant 0.001953125 : f32
    %203 = vector.broadcast %cst_136 : f32 to vector<16x1xf32>
    %204 = arith.mulf %199, %203 : vector<16x1xf32>
    %cst_137 = arith.constant 0.001953125 : f32
    %205 = vector.broadcast %cst_137 : f32 to vector<16x1xf32>
    %206 = arith.mulf %202, %205 : vector<16x1xf32>
    %207 = arith.mulf %204, %204 : vector<16x1xf32>
    %208 = arith.subf %206, %207 : vector<16x1xf32>
    %c0_138 = arith.constant 0 : index
    %c0_139 = arith.constant 0 : index
    %209 = vector.load %arg6[%c0_138, %c0_139] : memref<16x1xf32, #tpu.memory_space<vmem>>, vector<16x1xf32>
    %cst_140 = arith.constant 9.99999974E-6 : f32
    %210 = vector.broadcast %cst_140 : f32 to vector<16x1xf32>
    %211 = arith.addf %208, %210 : vector<16x1xf32>
    %212 = math.rsqrt %211 : vector<16x1xf32>
    %213 = arith.mulf %209, %212 : vector<16x1xf32>
    %c0_141 = arith.constant 0 : index
    %c0_142 = arith.constant 0 : index
    %214 = vector.load %arg7[%c0_141, %c0_142] : memref<16x1xf32, #tpu.memory_space<vmem>>, vector<16x1xf32>
    %215 = arith.mulf %204, %213 : vector<16x1xf32>
    %216 = arith.subf %214, %215 : vector<16x1xf32>
    %217 = vector.broadcast %213 : vector<16x1xf32> to vector<16x512xf32>
    %218 = arith.mulf %197, %217 : vector<16x512xf32>
    %219 = vector.broadcast %216 : vector<16x1xf32> to vector<16x512xf32>
    %220 = arith.addf %218, %219 : vector<16x512xf32>
    %cst_143 = arith.constant 0.000000e+00 : f32
    %221 = vector.broadcast %cst_143 : f32 to vector<16x512xf32>
    %222 = arith.maximumf %220, %221 : vector<16x512xf32>
    %223 = vector.extract_strided_slice %222 {offsets = [0, 0], sizes = [16, 256], strides = [1, 1]} : vector<16x512xf32> to vector<16x256xf32>
    %c0_144 = arith.constant 0 : index
    %c0_145 = arith.constant 0 : index
    %c0_146 = arith.constant 0 : index
    %224 = vector.load %arg8[%c0_144, %c0_145, %c0_146] : memref<2x16x256xf32, #tpu.memory_space<vmem>>, vector<1x16x256xf32>
    %225 = vector.shape_cast %224 : vector<1x16x256xf32> to vector<16x256xf32>
    %226 = vector.shape_cast %223 : vector<16x256xf32> to vector<1x16x256xf32>
    tpu.vector_store %arg8[%c0_144, %c0_145, %c0_146], %226 {strides = array<i32>} : memref<2x16x256xf32, #tpu.memory_space<vmem>>, vector<1x16x256xf32>,
    %227 = vector.extract_strided_slice %222 {offsets = [0, 256], sizes = [16, 256], strides = [1, 1]} : vector<16x512xf32> to vector<16x256xf32>
    %c1_147 = arith.constant 1 : index
    %c0_148 = arith.constant 0 : index
    %c0_149 = arith.constant 0 : index
    %228 = vector.load %arg8[%c1_147, %c0_148, %c0_149] : memref<2x16x256xf32, #tpu.memory_space<vmem>>, vector<1x16x256xf32>
    %229 = vector.shape_cast %228 : vector<1x16x256xf32> to vector<16x256xf32>
    %230 = vector.shape_cast %227 : vector<16x256xf32> to vector<1x16x256xf32>
    tpu.vector_store %arg8[%c1_147, %c0_148, %c0_149], %230 {strides = array<i32>} : memref<2x16x256xf32, #tpu.memory_space<vmem>>, vector<1x16x256xf32>,
    return
  }
}

</mosaic_0001>

<llo_original>
// kernel: tpu_custom_call.1
$region0: #{tpu_custom_call.1}
  #allocation0 [shape = 'u32[]', space=smem, size = 0x4, offset = 0x4, fixed_abs, tag = 'smem constant byte address 0x4 - core index']
  #allocation1 [shape = 'u32[72,128]{1,0:T(1,128)}', space=vmem, size = 0x9000, scoped, tag = 'internal scratch']
  %s0 = inlined_call_operand.hbm [shape: f32[2,8,256], index: 0, kind: input, shape index: {}]
  %s1 = inlined_call_operand.vmem [shape: f32[9,1,512], index: 1, kind: input, shape index: {}]
  %s2 = inlined_call_operand.vmem [shape: bf16[9,16,8], index: 2, kind: input, shape index: {}]
  %s3 = inlined_call_operand.vmem [shape: f32[16,1], index: 3, kind: input, shape index: {}]
  %s4 = inlined_call_operand.vmem [shape: f32[16,1], index: 4, kind: input, shape index: {}]
  %s5 = inlined_call_operand.vmem [shape: bf16[9,16,16], index: 5, kind: input, shape index: {}]
  %s6 = inlined_call_operand.vmem [shape: f32[16,1], index: 6, kind: input, shape index: {}]
  %s7 = inlined_call_operand.vmem [shape: f32[16,1], index: 7, kind: input, shape index: {}]
  %s8 = inlined_call_operand.hbm [shape: f32[2,16,256], index: 8, kind: output, shape index: {}]
  %s9 = sld [smem:[#allocation0]]
  $region46: #{tpu_custom_call.1} parent=0
    _
  %s11 = ssub.s32 1, %s9
  %s12 = scalar_select 0, %s11, %s9
  $region1: #{tpu_custom_call.1} parent=0
    #allocation2 [shape = 'u8[16384]{0}', space=vmem, size = 0x4000, scoped, tag = 'input window, operand 0, single buffered']
    #allocation3 [shape = 's32[1]{0}', space=sflag, size = 0x4, scoped, tag = 'scoped memory for tpu_custom_call.1']
    #allocation4 [shape = 's32[1]{0}', space=sflag, size = 0x4, scoped, tag = 'scoped memory for tpu_custom_call.1']
    #allocation5 [shape = 'u8[32768]{0}', space=vmem, size = 0x8000, scoped, tag = 'output window, operand 0, single buffered']
    %13 = vsyncpa [#allocation3], 0
    %14 = vsyncpa [#allocation4], 0
    // Predicated region
    $region2: #{tpu_custom_call.1} parent=1 // pred_check
      _
    $region3: #{tpu_custom_call.1} parent=1 // pred_check_branch
      %16 = sbr.rel (0) target = $region5
    $region4: #{tpu_custom_call.1} parent=1 // pred_region
      %18 = vsyncadd [#allocation3], 0
      %s19 = sshll.u32 %s0, 4
      %s20 = int_to_ptr.hbm [resolvable:$true] %s19
      %s21 = sshll.u32 [#allocation2], 4
      %s22 = int_to_ptr.vmem [resolvable:$true] %s21
      %27 = dma.hbm_to_vmem [thread:$0]  %s20, 512, %s22, [#allocation3], 256, 256, 16
    $region5: #{tpu_custom_call.1} parent=1 // pred_fallthru
      _
    // Predicated region
    $region6: #{tpu_custom_call.1} parent=1 // pred_check
      _
    $region7: #{tpu_custom_call.1} parent=1 // pred_check_branch
      %29 = sbr.rel (0) target = $region9
    $region8: #{tpu_custom_call.1} parent=1 // pred_region
      _
    $region9: #{tpu_custom_call.1} parent=1 // pred_fallthru
      _
    // Predicated region
    $region10: #{tpu_custom_call.1} parent=1 // pred_check
      _
    $region11: #{tpu_custom_call.1} parent=1 // pred_check_branch
      %31 = sbr.rel (0) target = $region13
    $region12: #{tpu_custom_call.1} parent=1 // pred_region
      _
    $region13: #{tpu_custom_call.1} parent=1 // pred_fallthru
      _
    // Predicated region
    $region14: #{tpu_custom_call.1} parent=1 // pred_check
      _
    $region15: #{tpu_custom_call.1} parent=1 // pred_check_branch
      %33 = sbr.rel (0) target = $region17
    $region16: #{tpu_custom_call.1} parent=1 // pred_region
      _
    $region17: #{tpu_custom_call.1} parent=1 // pred_fallthru
      _
    // Predicated region
    $region18: #{tpu_custom_call.1} parent=1 // pred_check
      _
    $region19: #{tpu_custom_call.1} parent=1 // pred_check_branch
      %35 = sbr.rel (0) target = $region21
    $region20: #{tpu_custom_call.1} parent=1 // pred_region
      _
    $region21: #{tpu_custom_call.1} parent=1 // pred_fallthru
      _
    // Predicated region
    $region22: #{tpu_custom_call.1} parent=1 // pred_check
      _
    $region23: #{tpu_custom_call.1} parent=1 // pred_check_branch
      %37 = sbr.rel (0) target = $region25
    $region24: #{tpu_custom_call.1} parent=1 // pred_region
      _
    $region25: #{tpu_custom_call.1} parent=1 // pred_fallthru
      _
    // Predicated region
    $region26: #{tpu_custom_call.1} parent=1 // pred_check
      _
    $region27: #{tpu_custom_call.1} parent=1 // pred_check_branch
      %39 = sbr.rel (0) target = $region29
    $region28: #{tpu_custom_call.1} parent=1 // pred_region
      _
    $region29: #{tpu_custom_call.1} parent=1 // pred_fallthru
      _
    // Predicated region
    $region30: #{tpu_custom_call.1} parent=1 // pred_check
      _
    $region31: #{tpu_custom_call.1} parent=1 // pred_check_branch
      %41 = sbr.rel (0) target = $region33
    $region32: #{tpu_custom_call.1} parent=1 // pred_region
      _
    $region33: #{tpu_custom_call.1} parent=1 // pred_fallthru
      _
    // Predicated region
    $region34: #{tpu_custom_call.1} parent=1 // pred_check
      _
    $region35: #{tpu_custom_call.1} parent=1 // pred_check_branch
      %43 = sbr.rel (0) target = $region37
    $region36: #{tpu_custom_call.1} parent=1 // pred_region
      %45 = dma.done [#allocation3], 512
    $region37: #{tpu_custom_call.1} parent=1 // pred_fallthru
      _
    %v47 = vld [vmem:[#allocation2] sm:$0xff]
    %v48 = vld [vmem:[#allocation2 + $0x8] sm:$0xff]
    %s49 = scalar_lea.vmem [#allocation2], 16
    %v50 = vld [vmem:[%s49] sm:$0xff]
    %v51 = vld [vmem:[%s49 + $0x8] sm:$0xff]
    %52 = vrot.lane.b32.xlu0 %v47, 17
    %v53 = vpop.permute.xlu0 %52
    %54 = vrot.lane.b32.xlu0 %v48, 17
    %v55 = vpop.permute.xlu0 %54
    %56 = vrot.lane.b32.xlu0 %v50, 17
    %v57 = vpop.permute.xlu0 %56
    %58 = vrot.lane.b32.xlu0 %v51, 17
    %v59 = vpop.permute.xlu0 %58
    %v60 = vlaneseq
    %v61 = vand.u32 %v60, 127
    %vm62 = vcmp.lt.s32.totalorder %v61, 17
    %v63 = vsel %vm62, %v57, %v59
    %v64 = vsel %vm62, %v55, %v57
    %v65 = vsel %vm62, %v53, %v55
    %v66 = vsel %vm62, %v59, %v53
    %v67 = vld [vmem:[%s1] sm:$0xf]
    %v69 = vperm.slane %v67, 0
    %v70 = vperm.slane %v67, 1
    %v71 = vperm.slane %v67, 2
    %v72 = vperm.slane %v67, 3
    %v77 = vmul.f32 %v66, %v69
    %v78 = vmul.f32 %v65, %v70
    %v79 = vmul.f32 %v64, %v71
    %v80 = vmul.f32 %v63, %v72
    %v81 = vld [vmem:[%s2] sm:$0xf]
    %v82 = vld [vmem:[%s2 + $0x4] sm:$0xf]
    %v83 = vpack.c.bf16 %v77, %v77
    %v84 = vpack.c.bf16 %v78, %v78
    %v85 = vpack.c.bf16 %v79, %v79
    %v86 = vpack.c.bf16 %v80, %v80
    %87 = vrot.lane.b32.xlu0 %v47, 16
    %v88 = vpop.permute.xlu0 %87
    %89 = vrot.lane.b32.xlu0 %v48, 16
    %v90 = vpop.permute.xlu0 %89
    %91 = vrot.lane.b32.xlu0 %v50, 16
    %v92 = vpop.permute.xlu0 %91
    %93 = vrot.lane.b32.xlu0 %v51, 16
    %v94 = vpop.permute.xlu0 %93
    %vm95 = vcmp.lt.s32.totalorder %v61, 16
    %v96 = vsel %vm95, %v92, %v94
    %v97 = vsel %vm95, %v90, %v92
    %v98 = vsel %vm95, %v88, %v90
    %v99 = vsel %vm95, %v94, %v88
    %s100 = scalar_lea.vmem %s1, 4
    %v101 = vld [vmem:[%s100] sm:$0xf]
    %v103 = vperm.slane %v101, 0
    %v104 = vperm.slane %v101, 1
    %v105 = vperm.slane %v101, 2
    %v106 = vperm.slane %v101, 3
    %v111 = vmul.f32 %v99, %v103
    %v112 = vmul.f32 %v98, %v104
    %v113 = vmul.f32 %v97, %v105
    %v114 = vmul.f32 %v96, %v106
    %s115 = scalar_lea.vmem %s2, 8
    %v116 = vld [vmem:[%s115] sm:$0xf]
    %v117 = vld [vmem:[%s115 + $0x4] sm:$0xf]
    %v118 = vpack.c.bf16 %v111, %v111
    %v119 = vpack.c.bf16 %v112, %v112
    %v120 = vpack.c.bf16 %v113, %v113
    %v121 = vpack.c.bf16 %v114, %v114
    %v124 = vunpack.c.l.b16 %v116
    %v125 = vunpack.c.l.b16 %v117
    %v126 = vpack.c.b16 %v125, %v124
    %vm127 = vcmask 64512
    %v129 = vsel %vm127, %v126, 0
    %vm131 = vcmask 1043456
    %v133 = vsel %vm131, %v118, 0
    %v136 = vsel %vm131, %v119, 0
    %v139 = vsel %vm131, %v120, 0
    %v142 = vsel %vm131, %v121, 0
    %144 = vmatpush.bf16.msra.mxu0 0
    %145 = vmatpush.bf16.msra.mxu0 0
    %146 = vmatpush.bf16.msra.mxu0 0
    %147 = vmatpush.bf16.msra.mxu0 0
    %148 = vmatpush.bf16.msra.mxu0 0
    %149 = vmatpush.bf16.msra.mxu0 0
    %150 = vmatpush.bf16.msra.mxu0 0
    %151 = vmatpush.bf16.msra.mxu0 %v133
    %152 = vmatmul.bf16.gmra.mxu0 %v129
    %v153 = vpop.f32.mrf.mxu0
    %v154 = vadd.f32 0.0, %v153
    %v155 = vpop.f32.mrf.mxu0
    %v156 = vadd.f32 0.0, %v155
    %157 = vdwg.mxu0
    %158 = vmatpush.bf16.msra.mxu0 0
    %159 = vmatpush.bf16.msra.mxu0 0
    %160 = vmatpush.bf16.msra.mxu0 0
    %161 = vmatpush.bf16.msra.mxu0 0
    %162 = vmatpush.bf16.msra.mxu0 0
    %163 = vmatpush.bf16.msra.mxu0 0
    %164 = vmatpush.bf16.msra.mxu0 0
    %165 = vmatpush.bf16.msra.mxu0 %v136
    %166 = vmatmul.bf16.gmra.mxu0 %v129
    %v167 = vpop.f32.mrf.mxu0
    %v168 = vadd.f32 0.0, %v167
    %v169 = vpop.f32.mrf.mxu0
    %v170 = vadd.f32 0.0, %v169
    %171 = vdwg.mxu0
    %172 = vmatpush.bf16.msra.mxu0 0
    %173 = vmatpush.bf16.msra.mxu0 0
    %174 = vmatpush.bf16.msra.mxu0 0
    %175 = vmatpush.bf16.msra.mxu0 0
    %176 = vmatpush.bf16.msra.mxu0 0
    %177 = vmatpush.bf16.msra.mxu0 0
    %178 = vmatpush.bf16.msra.mxu0 0
    %179 = vmatpush.bf16.msra.mxu0 %v139
    %180 = vmatmul.bf16.gmra.mxu0 %v129
    %v181 = vpop.f32.mrf.mxu0
    %v182 = vadd.f32 0.0, %v181
    %v183 = vpop.f32.mrf.mxu0
    %v184 = vadd.f32 0.0, %v183
    %185 = vdwg.mxu0
    %186 = vmatpush.bf16.msra.mxu0 0
    %187 = vmatpush.bf16.msra.mxu0 0
    %188 = vmatpush.bf16.msra.mxu0 0
    %189 = vmatpush.bf16.msra.mxu0 0
    %190 = vmatpush.bf16.msra.mxu0 0
    %191 = vmatpush.bf16.msra.mxu0 0
    %192 = vmatpush.bf16.msra.mxu0 0
    %193 = vmatpush.bf16.msra.mxu0 %v142
    %194 = vmatmul.bf16.gmra.mxu0 %v129
    %v195 = vpop.f32.mrf.mxu0
    %v196 = vadd.f32 0.0, %v195
    %v197 = vpop.f32.mrf.mxu0
    %v198 = vadd.f32 0.0, %v197
    %199 = vdwg.mxu0
    %v202 = vunpack.c.l.b16 %v81
    %v203 = vunpack.c.l.b16 %v82
    %v204 = vpack.c.b16 %v203, %v202
    %v206 = vsel %vm127, %v204, 0
    %v209 = vsel %vm131, %v83, 0
    %v212 = vsel %vm131, %v84, 0
    %v215 = vsel %vm131, %v85, 0
    %v218 = vsel %vm131, %v86, 0
    %220 = vmatpush.bf16.msra.mxu0 0
    %221 = vmatpush.bf16.msra.mxu0 0
    %222 = vmatpush.bf16.msra.mxu0 0
    %223 = vmatpush.bf16.msra.mxu0 0
    %224 = vmatpush.bf16.msra.mxu0 0
    %225 = vmatpush.bf16.msra.mxu0 0
    %226 = vmatpush.bf16.msra.mxu0 0
    %227 = vmatpush.bf16.msra.mxu0 %v209
    %228 = vmatmul.bf16.gmra.mxu0 %v206
    %v229 = vpop.f32.mrf.mxu0
    %v230 = vadd.f32 %v154, %v229
    %v231 = vpop.f32.mrf.mxu0
    %v232 = vadd.f32 %v156, %v231
    %233 = vdwg.mxu0
    %234 = vmatpush.bf16.msra.mxu0 0
    %235 = vmatpush.bf16.msra.mxu0 0
    %236 = vmatpush.bf16.msra.mxu0 0
    %237 = vmatpush.bf16.msra.mxu0 0
    %238 = vmatpush.bf16.msra.mxu0 0
    %239 = vmatpush.bf16.msra.mxu0 0
    %240 = vmatpush.bf16.msra.mxu0 0
    %241 = vmatpush.bf16.msra.mxu0 %v212
    %242 = vmatmul.bf16.gmra.mxu0 %v206
    %v243 = vpop.f32.mrf.mxu0
    %v244 = vadd.f32 %v168, %v243
    %v245 = vpop.f32.mrf.mxu0
    %v246 = vadd.f32 %v170, %v245
    %247 = vdwg.mxu0
    %248 = vmatpush.bf16.msra.mxu0 0
    %249 = vmatpush.bf16.msra.mxu0 0
    %250 = vmatpush.bf16.msra.mxu0 0
    %251 = vmatpush.bf16.msra.mxu0 0
    %252 = vmatpush.bf16.msra.mxu0 0
    %253 = vmatpush.bf16.msra.mxu0 0
    %254 = vmatpush.bf16.msra.mxu0 0
    %255 = vmatpush.bf16.msra.mxu0 %v215
    %256 = vmatmul.bf16.gmra.mxu0 %v206
    %v257 = vpop.f32.mrf.mxu0
    %v258 = vadd.f32 %v182, %v257
    %v259 = vpop.f32.mrf.mxu0
    %v260 = vadd.f32 %v184, %v259
    %261 = vdwg.mxu0
    %262 = vmatpush.bf16.msra.mxu0 0
    %263 = vmatpush.bf16.msra.mxu0 0
    %264 = vmatpush.bf16.msra.mxu0 0
    %265 = vmatpush.bf16.msra.mxu0 0
    %266 = vmatpush.bf16.msra.mxu0 0
    %267 = vmatpush.bf16.msra.mxu0 0
    %268 = vmatpush.bf16.msra.mxu0 0
    %269 = vmatpush.bf16.msra.mxu0 %v218
    %270 = vmatmul.bf16.gmra.mxu0 %v206
    %v271 = vpop.f32.mrf.mxu0
    %v272 = vadd.f32 %v196, %v271
    %v273 = vpop.f32.mrf.mxu0
    %v274 = vadd.f32 %v198, %v273
    %275 = vdwg.mxu0
    %276 = vrot.lane.b32.xlu0 %v47, 15
    %v277 = vpop.permute.xlu0 %276
    %278 = vrot.lane.b32.xlu0 %v48, 15
    %v279 = vpop.permute.xlu0 %278
    %280 = vrot.lane.b32.xlu0 %v50, 15
    %v281 = vpop.permute.xlu0 %280
    %282 = vrot.lane.b32.xlu0 %v51, 15
    %v283 = vpop.permute.xlu0 %282
    %vm284 = vcmp.lt.s32.totalorder %v61, 15
    %v285 = vsel %vm284, %v281, %v283
    %v286 = vsel %vm284, %v279, %v281
    %v287 = vsel %vm284, %v277, %v279
    %v288 = vsel %vm284, %v283, %v277
    %s289 = scalar_lea.vmem %s1, 8
    %v290 = vld [vmem:[%s289] sm:$0xf]
    %v292 = vperm.slane %v290, 0
    %v293 = vperm.slane %v290, 1
    %v294 = vperm.slane %v290, 2
    %v295 = vperm.slane %v290, 3
    %v300 = vmul.f32 %v288, %v292
    %v301 = vmul.f32 %v287, %v293
    %v302 = vmul.f32 %v286, %v294
    %v303 = vmul.f32 %v285, %v295
    %s304 = scalar_lea.vmem %s2, 16
    %v305 = vld [vmem:[%s304] sm:$0xf]
    %v306 = vld [vmem:[%s304 + $0x4] sm:$0xf]
    %v307 = vpack.c.bf16 %v300, %v300
    %v308 = vpack.c.bf16 %v301, %v301
    %v309 = vpack.c.bf16 %v302, %v302
    %v310 = vpack.c.bf16 %v303, %v303
    %v313 = vunpack.c.l.b16 %v305
    %v314 = vunpack.c.l.b16 %v306
    %v315 = vpack.c.b16 %v314, %v313
    %v317 = vsel %vm127, %v315, 0
    %v320 = vsel %vm131, %v307, 0
    %v323 = vsel %vm131, %v308, 0
    %v326 = vsel %vm131, %v309, 0
    %v329 = vsel %vm131, %v310, 0
    %331 = vmatpush.bf16.msra.mxu0 0
    %332 = vmatpush.bf16.msra.mxu0 0
    %333 = vmatpush.bf16.msra.mxu0 0
    %334 = vmatpush.bf16.msra.mxu0 0
    %335 = vmatpush.bf16.msra.mxu0 0
    %336 = vmatpush.bf16.msra.mxu0 0
    %337 = vmatpush.bf16.msra.mxu0 0
    %338 = vmatpush.bf16.msra.mxu0 %v320
    %339 = vmatmul.bf16.gmra.mxu0 %v317
    %v340 = vpop.f32.mrf.mxu0
    %v341 = vadd.f32 0.0, %v340
    %v342 = vpop.f32.mrf.mxu0
    %v343 = vadd.f32 0.0, %v342
    %344 = vdwg.mxu0
    %345 = vmatpush.bf16.msra.mxu0 0
    %346 = vmatpush.bf16.msra.mxu0 0
    %347 = vmatpush.bf16.msra.mxu0 0
    %348 = vmatpush.bf16.msra.mxu0 0
    %349 = vmatpush.bf16.msra.mxu0 0
    %350 = vmatpush.bf16.msra.mxu0 0
    %351 = vmatpush.bf16.msra.mxu0 0
    %352 = vmatpush.bf16.msra.mxu0 %v323
    %353 = vmatmul.bf16.gmra.mxu0 %v317
    %v354 = vpop.f32.mrf.mxu0
    %v355 = vadd.f32 0.0, %v354
    %v356 = vpop.f32.mrf.mxu0
    %v357 = vadd.f32 0.0, %v356
    %358 = vdwg.mxu0
    %359 = vmatpush.bf16.msra.mxu0 0
    %360 = vmatpush.bf16.msra.mxu0 0
    %361 = vmatpush.bf16.msra.mxu0 0
    %362 = vmatpush.bf16.msra.mxu0 0
    %363 = vmatpush.bf16.msra.mxu0 0
    %364 = vmatpush.bf16.msra.mxu0 0
    %365 = vmatpush.bf16.msra.mxu0 0
    %366 = vmatpush.bf16.msra.mxu0 %v326
    %367 = vmatmul.bf16.gmra.mxu0 %v317
    %v368 = vpop.f32.mrf.mxu0
    %v369 = vadd.f32 0.0, %v368
    %v370 = vpop.f32.mrf.mxu0
    %v371 = vadd.f32 0.0, %v370
    %372 = vdwg.mxu0
    %373 = vmatpush.bf16.msra.mxu0 0
    %374 = vmatpush.bf16.msra.mxu0 0
    %375 = vmatpush.bf16.msra.mxu0 0
    %376 = vmatpush.bf16.msra.mxu0 0
    %377 = vmatpush.bf16.msra.mxu0 0
    %378 = vmatpush.bf16.msra.mxu0 0
    %379 = vmatpush.bf16.msra.mxu0 0
    %380 = vmatpush.bf16.msra.mxu0 %v329
    %381 = vmatmul.bf16.gmra.mxu0 %v317
    %v382 = vpop.f32.mrf.mxu0
    %v383 = vadd.f32 0.0, %v382
    %v384 = vpop.f32.mrf.mxu0
    %v385 = vadd.f32 0.0, %v384
    %386 = vdwg.mxu0
    %v387 = vadd.f32 %v230, %v341
    %v388 = vadd.f32 %v244, %v355
    %v389 = vadd.f32 %v258, %v369
    %v390 = vadd.f32 %v272, %v383
    %v391 = vadd.f32 %v232, %v343
    %v392 = vadd.f32 %v246, %v357
    %v393 = vadd.f32 %v260, %v371
    %v394 = vadd.f32 %v274, %v385
    %395 = vrot.lane.b32.xlu0 %v47, 1
    %v396 = vpop.permute.xlu0 %395
    %397 = vrot.lane.b32.xlu0 %v48, 1
    %v398 = vpop.permute.xlu0 %397
    %399 = vrot.lane.b32.xlu0 %v50, 1
    %v400 = vpop.permute.xlu0 %399
    %401 = vrot.lane.b32.xlu0 %v51, 1
    %v402 = vpop.permute.xlu0 %401
    %vm403 = vcmp.lt.s32.totalorder %v61, 1
    %v404 = vsel %vm403, %v400, %v402
    %v405 = vsel %vm403, %v398, %v400
    %v406 = vsel %vm403, %v396, %v398
    %v407 = vsel %vm403, %v402, %v396
    %s408 = scalar_lea.vmem %s1, 12
    %v409 = vld [vmem:[%s408] sm:$0xf]
    %v411 = vperm.slane %v409, 0
    %v412 = vperm.slane %v409, 1
    %v413 = vperm.slane %v409, 2
    %v414 = vperm.slane %v409, 3
    %v419 = vmul.f32 %v407, %v411
    %v420 = vmul.f32 %v406, %v412
    %v421 = vmul.f32 %v405, %v413
    %v422 = vmul.f32 %v404, %v414
    %s423 = scalar_lea.vmem %s2, 24
    %v424 = vld [vmem:[%s423] sm:$0xf]
    %v425 = vld [vmem:[%s423 + $0x4] sm:$0xf]
    %v426 = vpack.c.bf16 %v419, %v419
    %v427 = vpack.c.bf16 %v420, %v420
    %v428 = vpack.c.bf16 %v421, %v421
    %v429 = vpack.c.bf16 %v422, %v422
    %v432 = vunpack.c.l.b16 %v424
    %v433 = vunpack.c.l.b16 %v425
    %v434 = vpack.c.b16 %v433, %v432
    %v436 = vsel %vm127, %v434, 0
    %v439 = vsel %vm131, %v426, 0
    %v442 = vsel %vm131, %v427, 0
    %v445 = vsel %vm131, %v428, 0
    %v448 = vsel %vm131, %v429, 0
    %450 = vmatpush.bf16.msra.mxu0 0
    %451 = vmatpush.bf16.msra.mxu0 0
    %452 = vmatpush.bf16.msra.mxu0 0
    %453 = vmatpush.bf16.msra.mxu0 0
    %454 = vmatpush.bf16.msra.mxu0 0
    %455 = vmatpush.bf16.msra.mxu0 0
    %456 = vmatpush.bf16.msra.mxu0 0
    %457 = vmatpush.bf16.msra.mxu0 %v439
    %458 = vmatmul.bf16.gmra.mxu0 %v436
    %v459 = vpop.f32.mrf.mxu0
    %v460 = vadd.f32 0.0, %v459
    %v461 = vpop.f32.mrf.mxu0
    %v462 = vadd.f32 0.0, %v461
    %463 = vdwg.mxu0
    %464 = vmatpush.bf16.msra.mxu0 0
    %465 = vmatpush.bf16.msra.mxu0 0
    %466 = vmatpush.bf16.msra.mxu0 0
    %467 = vmatpush.bf16.msra.mxu0 0
    %468 = vmatpush.bf16.msra.mxu0 0
    %469 = vmatpush.bf16.msra.mxu0 0
    %470 = vmatpush.bf16.msra.mxu0 0
    %471 = vmatpush.bf16.msra.mxu0 %v442
    %472 = vmatmul.bf16.gmra.mxu0 %v436
    %v473 = vpop.f32.mrf.mxu0
    %v474 = vadd.f32 0.0, %v473
    %v475 = vpop.f32.mrf.mxu0
    %v476 = vadd.f32 0.0, %v475
    %477 = vdwg.mxu0
    %478 = vmatpush.bf16.msra.mxu0 0
    %479 = vmatpush.bf16.msra.mxu0 0
    %480 = vmatpush.bf16.msra.mxu0 0
    %481 = vmatpush.bf16.msra.mxu0 0
    %482 = vmatpush.bf16.msra.mxu0 0
    %483 = vmatpush.bf16.msra.mxu0 0
    %484 = vmatpush.bf16.msra.mxu0 0
    %485 = vmatpush.bf16.msra.mxu0 %v445
    %486 = vmatmul.bf16.gmra.mxu0 %v436
    %v487 = vpop.f32.mrf.mxu0
    %v488 = vadd.f32 0.0, %v487
    %v489 = vpop.f32.mrf.mxu0
    %v490 = vadd.f32 0.0, %v489
    %491 = vdwg.mxu0
    %492 = vmatpush.bf16.msra.mxu0 0
    %493 = vmatpush.bf16.msra.mxu0 0
    %494 = vmatpush.bf16.msra.mxu0 0
    %495 = vmatpush.bf16.msra.mxu0 0
    %496 = vmatpush.bf16.msra.mxu0 0
    %497 = vmatpush.bf16.msra.mxu0 0
    %498 = vmatpush.bf16.msra.mxu0 0
    %499 = vmatpush.bf16.msra.mxu0 %v448
    %500 = vmatmul.bf16.gmra.mxu0 %v436
    %v501 = vpop.f32.mrf.mxu0
    %v502 = vadd.f32 0.0, %v501
    %v503 = vpop.f32.mrf.mxu0
    %v504 = vadd.f32 0.0, %v503
    %505 = vdwg.mxu0
    %v506 = vadd.f32 %v387, %v460
    %v507 = vadd.f32 %v388, %v474
    %v508 = vadd.f32 %v389, %v488
    %v509 = vadd.f32 %v390, %v502
    %v510 = vadd.f32 %v391, %v462
    %v511 = vadd.f32 %v392, %v476
    %v512 = vadd.f32 %v393, %v490
    %v513 = vadd.f32 %v394, %v504
    %s514 = scalar_lea.vmem %s2, 32
    %v515 = vld [vmem:[%s514] sm:$0xf]
    %v516 = vld [vmem:[%s514 + $0x4] sm:$0xf]
    %v517 = vpack.c.bf16 %v47, %v47
    %v518 = vpack.c.bf16 %v48, %v48
    %v519 = vpack.c.bf16 %v50, %v50
    %v520 = vpack.c.bf16 %v51, %v51
    %v523 = vunpack.c.l.b16 %v515
    %v524 = vunpack.c.l.b16 %v516
    %v525 = vpack.c.b16 %v524, %v523
    %v527 = vsel %vm127, %v525, 0
    %v530 = vsel %vm131, %v517, 0
    %v533 = vsel %vm131, %v518, 0
    %v536 = vsel %vm131, %v519, 0
    %v539 = vsel %vm131, %v520, 0
    %541 = vmatpush.bf16.msra.mxu0 0
    %542 = vmatpush.bf16.msra.mxu0 0
    %543 = vmatpush.bf16.msra.mxu0 0
    %544 = vmatpush.bf16.msra.mxu0 0
    %545 = vmatpush.bf16.msra.mxu0 0
    %546 = vmatpush.bf16.msra.mxu0 0
    %547 = vmatpush.bf16.msra.mxu0 0
    %548 = vmatpush.bf16.msra.mxu0 %v530
    %549 = vmatmul.bf16.gmra.mxu0 %v527
    %v550 = vpop.f32.mrf.mxu0
    %v551 = vadd.f32 0.0, %v550
    %v552 = vpop.f32.mrf.mxu0
    %v553 = vadd.f32 0.0, %v552
    %554 = vdwg.mxu0
    %555 = vmatpush.bf16.msra.mxu0 0
    %556 = vmatpush.bf16.msra.mxu0 0
    %557 = vmatpush.bf16.msra.mxu0 0
    %558 = vmatpush.bf16.msra.mxu0 0
    %559 = vmatpush.bf16.msra.mxu0 0
    %560 = vmatpush.bf16.msra.mxu0 0
    %561 = vmatpush.bf16.msra.mxu0 0
    %562 = vmatpush.bf16.msra.mxu0 %v533
    %563 = vmatmul.bf16.gmra.mxu0 %v527
    %v564 = vpop.f32.mrf.mxu0
    %v565 = vadd.f32 0.0, %v564
    %v566 = vpop.f32.mrf.mxu0
    %v567 = vadd.f32 0.0, %v566
    %568 = vdwg.mxu0
    %569 = vmatpush.bf16.msra.mxu0 0
    %570 = vmatpush.bf16.msra.mxu0 0
    %571 = vmatpush.bf16.msra.mxu0 0
    %572 = vmatpush.bf16.msra.mxu0 0
    %573 = vmatpush.bf16.msra.mxu0 0
    %574 = vmatpush.bf16.msra.mxu0 0
    %575 = vmatpush.bf16.msra.mxu0 0
    %576 = vmatpush.bf16.msra.mxu0 %v536
    %577 = vmatmul.bf16.gmra.mxu0 %v527
    %v578 = vpop.f32.mrf.mxu0
    %v579 = vadd.f32 0.0, %v578
    %v580 = vpop.f32.mrf.mxu0
    %v581 = vadd.f32 0.0, %v580
    %582 = vdwg.mxu0
    %583 = vmatpush.bf16.msra.mxu0 0
    %584 = vmatpush.bf16.msra.mxu0 0
    %585 = vmatpush.bf16.msra.mxu0 0
    %586 = vmatpush.bf16.msra.mxu0 0
    %587 = vmatpush.bf16.msra.mxu0 0
    %588 = vmatpush.bf16.msra.mxu0 0
    %589 = vmatpush.bf16.msra.mxu0 0
    %590 = vmatpush.bf16.msra.mxu0 %v539
    %591 = vmatmul.bf16.gmra.mxu0 %v527
    %v592 = vpop.f32.mrf.mxu0
    %v593 = vadd.f32 0.0, %v592
    %v594 = vpop.f32.mrf.mxu0
    %v595 = vadd.f32 0.0, %v594
    %596 = vdwg.mxu0
    %v597 = vadd.f32 %v506, %v551
    %v598 = vadd.f32 %v507, %v565
    %v599 = vadd.f32 %v508, %v579
    %v600 = vadd.f32 %v509, %v593
    %v601 = vadd.f32 %v510, %v553
    %v602 = vadd.f32 %v511, %v567
    %v603 = vadd.f32 %v512, %v581
    %v604 = vadd.f32 %v513, %v595
    %605 = vrot.lane.b32.xlu0 %v47, 127
    %v606 = vpop.permute.xlu0 %605
    %607 = vrot.lane.b32.xlu0 %v48, 127
    %v608 = vpop.permute.xlu0 %607
    %609 = vrot.lane.b32.xlu0 %v50, 127
    %v610 = vpop.permute.xlu0 %609
    %611 = vrot.lane.b32.xlu0 %v51, 127
    %v612 = vpop.permute.xlu0 %611
    %vm613 = vcmp.lt.s32.totalorder %v61, 127
    %v614 = vsel %vm613, %v610, %v612
    %v615 = vsel %vm613, %v608, %v610
    %v616 = vsel %vm613, %v606, %v608
    %v617 = vsel %vm613, %v612, %v606
    %s618 = scalar_lea.vmem %s1, 20
    %v619 = vld [vmem:[%s618] sm:$0xf]
    %v621 = vperm.slane %v619, 0
    %v622 = vperm.slane %v619, 1
    %v623 = vperm.slane %v619, 2
    %v624 = vperm.slane %v619, 3
    %v629 = vmul.f32 %v616, %v621
    %v630 = vmul.f32 %v615, %v622
    %v631 = vmul.f32 %v614, %v623
    %v632 = vmul.f32 %v617, %v624
    %s633 = scalar_lea.vmem %s2, 40
    %v634 = vld [vmem:[%s633] sm:$0xf]
    %v635 = vld [vmem:[%s633 + $0x4] sm:$0xf]
    %v636 = vpack.c.bf16 %v629, %v629
    %v637 = vpack.c.bf16 %v630, %v630
    %v638 = vpack.c.bf16 %v631, %v631
    %v639 = vpack.c.bf16 %v632, %v632
    %v642 = vunpack.c.l.b16 %v634
    %v643 = vunpack.c.l.b16 %v635
    %v644 = vpack.c.b16 %v643, %v642
    %v646 = vsel %vm127, %v644, 0
    %v649 = vsel %vm131, %v636, 0
    %v652 = vsel %vm131, %v637, 0
    %v655 = vsel %vm131, %v638, 0
    %v658 = vsel %vm131, %v639, 0
    %660 = vmatpush.bf16.msra.mxu0 0
    %661 = vmatpush.bf16.msra.mxu0 0
    %662 = vmatpush.bf16.msra.mxu0 0
    %663 = vmatpush.bf16.msra.mxu0 0
    %664 = vmatpush.bf16.msra.mxu0 0
    %665 = vmatpush.bf16.msra.mxu0 0
    %666 = vmatpush.bf16.msra.mxu0 0
    %667 = vmatpush.bf16.msra.mxu0 %v649
    %668 = vmatmul.bf16.gmra.mxu0 %v646
    %v669 = vpop.f32.mrf.mxu0
    %v670 = vadd.f32 0.0, %v669
    %v671 = vpop.f32.mrf.mxu0
    %v672 = vadd.f32 0.0, %v671
    %673 = vdwg.mxu0
    %674 = vmatpush.bf16.msra.mxu0 0
    %675 = vmatpush.bf16.msra.mxu0 0
    %676 = vmatpush.bf16.msra.mxu0 0
    %677 = vmatpush.bf16.msra.mxu0 0
    %678 = vmatpush.bf16.msra.mxu0 0
    %679 = vmatpush.bf16.msra.mxu0 0
    %680 = vmatpush.bf16.msra.mxu0 0
    %681 = vmatpush.bf16.msra.mxu0 %v652
    %682 = vmatmul.bf16.gmra.mxu0 %v646
    %v683 = vpop.f32.mrf.mxu0
    %v684 = vadd.f32 0.0, %v683
    %v685 = vpop.f32.mrf.mxu0
    %v686 = vadd.f32 0.0, %v685
    %687 = vdwg.mxu0
    %688 = vmatpush.bf16.msra.mxu0 0
    %689 = vmatpush.bf16.msra.mxu0 0
    %690 = vmatpush.bf16.msra.mxu0 0
    %691 = vmatpush.bf16.msra.mxu0 0
    %692 = vmatpush.bf16.msra.mxu0 0
    %693 = vmatpush.bf16.msra.mxu0 0
    %694 = vmatpush.bf16.msra.mxu0 0
    %695 = vmatpush.bf16.msra.mxu0 %v655
    %696 = vmatmul.bf16.gmra.mxu0 %v646
    %v697 = vpop.f32.mrf.mxu0
    %v698 = vadd.f32 0.0, %v697
    %v699 = vpop.f32.mrf.mxu0
    %v700 = vadd.f32 0.0, %v699
    %701 = vdwg.mxu0
    %702 = vmatpush.bf16.msra.mxu0 0
    %703 = vmatpush.bf16.msra.mxu0 0
    %704 = vmatpush.bf16.msra.mxu0 0
    %705 = vmatpush.bf16.msra.mxu0 0
    %706 = vmatpush.bf16.msra.mxu0 0
    %707 = vmatpush.bf16.msra.mxu0 0
    %708 = vmatpush.bf16.msra.mxu0 0
    %709 = vmatpush.bf16.msra.mxu0 %v658
    %710 = vmatmul.bf16.gmra.mxu0 %v646
    %v711 = vpop.f32.mrf.mxu0
    %v712 = vadd.f32 0.0, %v711
    %v713 = vpop.f32.mrf.mxu0
    %v714 = vadd.f32 0.0, %v713
    %715 = vdwg.mxu0
    %v716 = vadd.f32 %v597, %v670
    %v717 = vadd.f32 %v598, %v684
    %v718 = vadd.f32 %v599, %v698
    %v719 = vadd.f32 %v600, %v712
    %v720 = vadd.f32 %v601, %v672
    %v721 = vadd.f32 %v602, %v686
    %v722 = vadd.f32 %v603, %v700
    %v723 = vadd.f32 %v604, %v714
    %724 = vrot.lane.b32.xlu0 %v47, 113
    %v725 = vpop.permute.xlu0 %724
    %726 = vrot.lane.b32.xlu0 %v48, 113
    %v727 = vpop.permute.xlu0 %726
    %728 = vrot.lane.b32.xlu0 %v50, 113
    %v729 = vpop.permute.xlu0 %728
    %730 = vrot.lane.b32.xlu0 %v51, 113
    %v731 = vpop.permute.xlu0 %730
    %vm732 = vcmp.lt.s32.totalorder %v61, 113
    %v733 = vsel %vm732, %v729, %v731
    %v734 = vsel %vm732, %v727, %v729
    %v735 = vsel %vm732, %v725, %v727
    %v736 = vsel %vm732, %v731, %v725
    %s737 = scalar_lea.vmem %s1, 24
    %v738 = vld [vmem:[%s737] sm:$0xf]
    %v740 = vperm.slane %v738, 0
    %v741 = vperm.slane %v738, 1
    %v742 = vperm.slane %v738, 2
    %v743 = vperm.slane %v738, 3
    %v748 = vmul.f32 %v735, %v740
    %v749 = vmul.f32 %v734, %v741
    %v750 = vmul.f32 %v733, %v742
    %v751 = vmul.f32 %v736, %v743
    %s752 = scalar_lea.vmem %s2, 48
    %v753 = vld [vmem:[%s752] sm:$0xf]
    %v754 = vld [vmem:[%s752 + $0x4] sm:$0xf]
    %v755 = vpack.c.bf16 %v748, %v748
    %v756 = vpack.c.bf16 %v749, %v749
    %v757 = vpack.c.bf16 %v750, %v750
    %v758 = vpack.c.bf16 %v751, %v751
    %v761 = vunpack.c.l.b16 %v753
    %v762 = vunpack.c.l.b16 %v754
    %v763 = vpack.c.b16 %v762, %v761
    %v765 = vsel %vm127, %v763, 0
    %v768 = vsel %vm131, %v755, 0
    %v771 = vsel %vm131, %v756, 0
    %v774 = vsel %vm131, %v757, 0
    %v777 = vsel %vm131, %v758, 0
    %779 = vmatpush.bf16.msra.mxu0 0
    %780 = vmatpush.bf16.msra.mxu0 0
    %781 = vmatpush.bf16.msra.mxu0 0
    %782 = vmatpush.bf16.msra.mxu0 0
    %783 = vmatpush.bf16.msra.mxu0 0
    %784 = vmatpush.bf16.msra.mxu0 0
    %785 = vmatpush.bf16.msra.mxu0 0
    %786 = vmatpush.bf16.msra.mxu0 %v768
    %787 = vmatmul.bf16.gmra.mxu0 %v765
    %v788 = vpop.f32.mrf.mxu0
    %v789 = vadd.f32 0.0, %v788
    %v790 = vpop.f32.mrf.mxu0
    %v791 = vadd.f32 0.0, %v790
    %792 = vdwg.mxu0
    %793 = vmatpush.bf16.msra.mxu0 0
    %794 = vmatpush.bf16.msra.mxu0 0
    %795 = vmatpush.bf16.msra.mxu0 0
    %796 = vmatpush.bf16.msra.mxu0 0
    %797 = vmatpush.bf16.msra.mxu0 0
    %798 = vmatpush.bf16.msra.mxu0 0
    %799 = vmatpush.bf16.msra.mxu0 0
    %800 = vmatpush.bf16.msra.mxu0 %v771
    %801 = vmatmul.bf16.gmra.mxu0 %v765
    %v802 = vpop.f32.mrf.mxu0
    %v803 = vadd.f32 0.0, %v802
    %v804 = vpop.f32.mrf.mxu0
    %v805 = vadd.f32 0.0, %v804
    %806 = vdwg.mxu0
    %807 = vmatpush.bf16.msra.mxu0 0
    %808 = vmatpush.bf16.msra.mxu0 0
    %809 = vmatpush.bf16.msra.mxu0 0
    %810 = vmatpush.bf16.msra.mxu0 0
    %811 = vmatpush.bf16.msra.mxu0 0
    %812 = vmatpush.bf16.msra.mxu0 0
    %813 = vmatpush.bf16.msra.mxu0 0
    %814 = vmatpush.bf16.msra.mxu0 %v774
    %815 = vmatmul.bf16.gmra.mxu0 %v765
    %v816 = vpop.f32.mrf.mxu0
    %v817 = vadd.f32 0.0, %v816
    %v818 = vpop.f32.mrf.mxu0
    %v819 = vadd.f32 0.0, %v818
    %820 = vdwg.mxu0
    %821 = vmatpush.bf16.msra.mxu0 0
    %822 = vmatpush.bf16.msra.mxu0 0
    %823 = vmatpush.bf16.msra.mxu0 0
    %824 = vmatpush.bf16.msra.mxu0 0
    %825 = vmatpush.bf16.msra.mxu0 0
    %826 = vmatpush.bf16.msra.mxu0 0
    %827 = vmatpush.bf16.msra.mxu0 0
    %828 = vmatpush.bf16.msra.mxu0 %v777
    %829 = vmatmul.bf16.gmra.mxu0 %v765
    %v830 = vpop.f32.mrf.mxu0
    %v831 = vadd.f32 0.0, %v830
    %v832 = vpop.f32.mrf.mxu0
    %v833 = vadd.f32 0.0, %v832
    %834 = vdwg.mxu0
    %v835 = vadd.f32 %v716, %v789
    %v836 = vadd.f32 %v717, %v803
    %v837 = vadd.f32 %v718, %v817
    %v838 = vadd.f32 %v719, %v831
    %v839 = vadd.f32 %v720, %v791
    %v840 = vadd.f32 %v721, %v805
    %v841 = vadd.f32 %v722, %v819
    %v842 = vadd.f32 %v723, %v833
    %843 = vrot.lane.b32.xlu0 %v47, 112
    %v844 = vpop.permute.xlu0 %843
    %845 = vrot.lane.b32.xlu0 %v48, 112
    %v846 = vpop.permute.xlu0 %845
    %847 = vrot.lane.b32.xlu0 %v50, 112
    %v848 = vpop.permute.xlu0 %847
    %849 = vrot.lane.b32.xlu0 %v51, 112
    %v850 = vpop.permute.xlu0 %849
    %vm851 = vcmp.lt.s32.totalorder %v61, 112
    %v852 = vsel %vm851, %v848, %v850
    %v853 = vsel %vm851, %v846, %v848
    %v854 = vsel %vm851, %v844, %v846
    %v855 = vsel %vm851, %v850, %v844
    %s856 = scalar_lea.vmem %s1, 28
    %v857 = vld [vmem:[%s856] sm:$0xf]
    %v859 = vperm.slane %v857, 0
    %v860 = vperm.slane %v857, 1
    %v861 = vperm.slane %v857, 2
    %v862 = vperm.slane %v857, 3
    %v867 = vmul.f32 %v854, %v859
    %v868 = vmul.f32 %v853, %v860
    %v869 = vmul.f32 %v852, %v861
    %v870 = vmul.f32 %v855, %v862
    %s871 = scalar_lea.vmem %s2, 56
    %v872 = vld [vmem:[%s871] sm:$0xf]
    %v873 = vld [vmem:[%s871 + $0x4] sm:$0xf]
    %v874 = vpack.c.bf16 %v867, %v867
    %v875 = vpack.c.bf16 %v868, %v868
    %v876 = vpack.c.bf16 %v869, %v869
    %v877 = vpack.c.bf16 %v870, %v870
    %v880 = vunpack.c.l.b16 %v872
    %v881 = vunpack.c.l.b16 %v873
    %v882 = vpack.c.b16 %v881, %v880
    %v884 = vsel %vm127, %v882, 0
    %v887 = vsel %vm131, %v874, 0
    %v890 = vsel %vm131, %v875, 0
    %v893 = vsel %vm131, %v876, 0
    %v896 = vsel %vm131, %v877, 0
    %898 = vmatpush.bf16.msra.mxu0 0
    %899 = vmatpush.bf16.msra.mxu0 0
    %900 = vmatpush.bf16.msra.mxu0 0
    %901 = vmatpush.bf16.msra.mxu0 0
    %902 = vmatpush.bf16.msra.mxu0 0
    %903 = vmatpush.bf16.msra.mxu0 0
    %904 = vmatpush.bf16.msra.mxu0 0
    %905 = vmatpush.bf16.msra.mxu0 %v887
    %906 = vmatmul.bf16.gmra.mxu0 %v884
    %v907 = vpop.f32.mrf.mxu0
    %v908 = vadd.f32 0.0, %v907
    %v909 = vpop.f32.mrf.mxu0
    %v910 = vadd.f32 0.0, %v909
    %911 = vdwg.mxu0
    %912 = vmatpush.bf16.msra.mxu0 0
    %913 = vmatpush.bf16.msra.mxu0 0
    %914 = vmatpush.bf16.msra.mxu0 0
    %915 = vmatpush.bf16.msra.mxu0 0
    %916 = vmatpush.bf16.msra.mxu0 0
    %917 = vmatpush.bf16.msra.mxu0 0
    %918 = vmatpush.bf16.msra.mxu0 0
    %919 = vmatpush.bf16.msra.mxu0 %v890
    %920 = vmatmul.bf16.gmra.mxu0 %v884
    %v921 = vpop.f32.mrf.mxu0
    %v922 = vadd.f32 0.0, %v921
    %v923 = vpop.f32.mrf.mxu0
    %v924 = vadd.f32 0.0, %v923
    %925 = vdwg.mxu0
    %926 = vmatpush.bf16.msra.mxu0 0
    %927 = vmatpush.bf16.msra.mxu0 0
    %928 = vmatpush.bf16.msra.mxu0 0
    %929 = vmatpush.bf16.msra.mxu0 0
    %930 = vmatpush.bf16.msra.mxu0 0
    %931 = vmatpush.bf16.msra.mxu0 0
    %932 = vmatpush.bf16.msra.mxu0 0
    %933 = vmatpush.bf16.msra.mxu0 %v893
    %934 = vmatmul.bf16.gmra.mxu0 %v884
    %v935 = vpop.f32.mrf.mxu0
    %v936 = vadd.f32 0.0, %v935
    %v937 = vpop.f32.mrf.mxu0
    %v938 = vadd.f32 0.0, %v937
    %939 = vdwg.mxu0
    %940 = vmatpush.bf16.msra.mxu0 0
    %941 = vmatpush.bf16.msra.mxu0 0
    %942 = vmatpush.bf16.msra.mxu0 0
    %943 = vmatpush.bf16.msra.mxu0 0
    %944 = vmatpush.bf16.msra.mxu0 0
    %945 = vmatpush.bf16.msra.mxu0 0
    %946 = vmatpush.bf16.msra.mxu0 0
    %947 = vmatpush.bf16.msra.mxu0 %v896
    %948 = vmatmul.bf16.gmra.mxu0 %v884
    %v949 = vpop.f32.mrf.mxu0
    %v950 = vadd.f32 0.0, %v949
    %v951 = vpop.f32.mrf.mxu0
    %v952 = vadd.f32 0.0, %v951
    %953 = vdwg.mxu0
    %v954 = vadd.f32 %v835, %v908
    %v955 = vadd.f32 %v836, %v922
    %v956 = vadd.f32 %v837, %v936
    %v957 = vadd.f32 %v838, %v950
    %v958 = vadd.f32 %v839, %v910
    %v959 = vadd.f32 %v840, %v924
    %v960 = vadd.f32 %v841, %v938
    %v961 = vadd.f32 %v842, %v952
    %962 = vrot.lane.b32.xlu0 %v47, 111
    %v963 = vpop.permute.xlu0 %962
    %964 = vrot.lane.b32.xlu0 %v48, 111
    %v965 = vpop.permute.xlu0 %964
    %966 = vrot.lane.b32.xlu0 %v50, 111
    %v967 = vpop.permute.xlu0 %966
    %968 = vrot.lane.b32.xlu0 %v51, 111
    %v969 = vpop.permute.xlu0 %968
    %vm970 = vcmp.lt.s32.totalorder %v61, 111
    %v971 = vsel %vm970, %v967, %v969
    %v972 = vsel %vm970, %v965, %v967
    %v973 = vsel %vm970, %v963, %v965
    %v974 = vsel %vm970, %v969, %v963
    %s975 = scalar_lea.vmem %s1, 32
    %v976 = vld [vmem:[%s975] sm:$0xf]
    %v978 = vperm.slane %v976, 0
    %v979 = vperm.slane %v976, 1
    %v980 = vperm.slane %v976, 2
    %v981 = vperm.slane %v976, 3
    %v986 = vmul.f32 %v973, %v978
    %v987 = vmul.f32 %v972, %v979
    %v988 = vmul.f32 %v971, %v980
    %v989 = vmul.f32 %v974, %v981
    %s990 = scalar_lea.vmem %s2, 64
    %v991 = vld [vmem:[%s990] sm:$0xf]
    %v992 = vld [vmem:[%s990 + $0x4] sm:$0xf]
    %v993 = vpack.c.bf16 %v986, %v986
    %v994 = vpack.c.bf16 %v987, %v987
    %v995 = vpack.c.bf16 %v988, %v988
    %v996 = vpack.c.bf16 %v989, %v989
    %v999 = vunpack.c.l.b16 %v991
    %v1000 = vunpack.c.l.b16 %v992
    %v1001 = vpack.c.b16 %v1000, %v999
    %v1003 = vsel %vm127, %v1001, 0
    %v1006 = vsel %vm131, %v993, 0
    %v1009 = vsel %vm131, %v994, 0
    %v1012 = vsel %vm131, %v995, 0
    %v1015 = vsel %vm131, %v996, 0
    %1017 = vmatpush.bf16.msra.mxu0 0
    %1018 = vmatpush.bf16.msra.mxu0 0
    %1019 = vmatpush.bf16.msra.mxu0 0
    %1020 = vmatpush.bf16.msra.mxu0 0
    %1021 = vmatpush.bf16.msra.mxu0 0
    %1022 = vmatpush.bf16.msra.mxu0 0
    %1023 = vmatpush.bf16.msra.mxu0 0
    %1024 = vmatpush.bf16.msra.mxu0 %v1006
    %1025 = vmatmul.bf16.gmra.mxu0 %v1003
    %v1026 = vpop.f32.mrf.mxu0
    %v1027 = vadd.f32 0.0, %v1026
    %v1028 = vpop.f32.mrf.mxu0
    %v1029 = vadd.f32 0.0, %v1028
    %1030 = vdwg.mxu0
    %1031 = vmatpush.bf16.msra.mxu0 0
    %1032 = vmatpush.bf16.msra.mxu0 0
    %1033 = vmatpush.bf16.msra.mxu0 0
    %1034 = vmatpush.bf16.msra.mxu0 0
    %1035 = vmatpush.bf16.msra.mxu0 0
    %1036 = vmatpush.bf16.msra.mxu0 0
    %1037 = vmatpush.bf16.msra.mxu0 0
    %1038 = vmatpush.bf16.msra.mxu0 %v1009
    %1039 = vmatmul.bf16.gmra.mxu0 %v1003
    %v1040 = vpop.f32.mrf.mxu0
    %v1041 = vadd.f32 0.0, %v1040
    %v1042 = vpop.f32.mrf.mxu0
    %v1043 = vadd.f32 0.0, %v1042
    %1044 = vdwg.mxu0
    %1045 = vmatpush.bf16.msra.mxu0 0
    %1046 = vmatpush.bf16.msra.mxu0 0
    %1047 = vmatpush.bf16.msra.mxu0 0
    %1048 = vmatpush.bf16.msra.mxu0 0
    %1049 = vmatpush.bf16.msra.mxu0 0
    %1050 = vmatpush.bf16.msra.mxu0 0
    %1051 = vmatpush.bf16.msra.mxu0 0
    %1052 = vmatpush.bf16.msra.mxu0 %v1012
    %1053 = vmatmul.bf16.gmra.mxu0 %v1003
    %v1054 = vpop.f32.mrf.mxu0
    %v1055 = vadd.f32 0.0, %v1054
    %v1056 = vpop.f32.mrf.mxu0
    %v1057 = vadd.f32 0.0, %v1056
    %1058 = vdwg.mxu0
    %1059 = vmatpush.bf16.msra.mxu0 0
    %1060 = vmatpush.bf16.msra.mxu0 0
    %1061 = vmatpush.bf16.msra.mxu0 0
    %1062 = vmatpush.bf16.msra.mxu0 0
    %1063 = vmatpush.bf16.msra.mxu0 0
    %1064 = vmatpush.bf16.msra.mxu0 0
    %1065 = vmatpush.bf16.msra.mxu0 0
    %1066 = vmatpush.bf16.msra.mxu0 %v1015
    %1067 = vmatmul.bf16.gmra.mxu0 %v1003
    %v1068 = vpop.f32.mrf.mxu0
    %v1069 = vadd.f32 0.0, %v1068
    %v1070 = vpop.f32.mrf.mxu0
    %v1071 = vadd.f32 0.0, %v1070
    %1072 = vdwg.mxu0
    %v1073 = vadd.f32 %v954, %v1027
    %v1074 = vadd.f32 %v955, %v1041
    %v1075 = vadd.f32 %v956, %v1055
    %v1076 = vadd.f32 %v957, %v1069
    %v1077 = vadd.f32 %v958, %v1029
    %v1078 = vadd.f32 %v959, %v1043
    %v1079 = vadd.f32 %v960, %v1057
    %v1080 = vadd.f32 %v961, %v1071
    %v1081 = vadd.f32 %v1073, %v1074
    %v1082 = vadd.f32 %v1081, %v1075
    %v1083 = vadd.f32 %v1082, %v1076
    %1084 = vadd.xlane.f32.xlu0 %v1083
    %v1085 = vpop.xlane.xlu0 %1084
    %v1086 = vadd.f32 %v1077, %v1078
    %v1087 = vadd.f32 %v1086, %v1079
    %v1088 = vadd.f32 %v1087, %v1080
    %1089 = vadd.xlane.f32.xlu0 %v1088
    %v1090 = vpop.xlane.xlu0 %1089
    %v1091 = vmul.f32 %v1073, %v1073
    %v1092 = vmul.f32 %v1074, %v1074
    %v1093 = vmul.f32 %v1075, %v1075
    %v1094 = vmul.f32 %v1076, %v1076
    %v1095 = vmul.f32 %v1077, %v1077
    %v1096 = vmul.f32 %v1078, %v1078
    %v1097 = vmul.f32 %v1079, %v1079
    %v1098 = vmul.f32 %v1080, %v1080
    %v1099 = vadd.f32 %v1091, %v1092
    %v1100 = vadd.f32 %v1099, %v1093
    %v1101 = vadd.f32 %v1100, %v1094
    %1102 = vadd.xlane.f32.xlu0 %v1101
    %v1103 = vpop.xlane.xlu0 %1102
    %v1104 = vadd.f32 %v1095, %v1096
    %v1105 = vadd.f32 %v1104, %v1097
    %v1106 = vadd.f32 %v1105, %v1098
    %1107 = vadd.xlane.f32.xlu0 %v1106
    %v1108 = vpop.xlane.xlu0 %1107
    %v1109 = vmul.f32 %v1085, 0.001953125
    %v1110 = vmul.f32 %v1090, 0.001953125
    %v1111 = vmul.f32 %v1103, 0.001953125
    %v1112 = vmul.f32 %v1108, 0.001953125
    %v1113 = vmul.f32 %v1109, %v1109
    %v1114 = vmul.f32 %v1110, %v1110
    %v1115 = vsub.f32 %v1111, %v1113
    %v1116 = vsub.f32 %v1112, %v1114
    %v1117 = vld [vmem:[%s3] sm:$0xff]
    %v1118 = vld [vmem:[%s3 + $0x8] sm:$0xff]
    %v1119 = vadd.f32 %v1115, 1e-05
    %v1120 = vadd.f32 %v1116, 1e-05
    %v1121 = vrsqrt.pop %v1119
    %v1122 = vmul.f32 %v1121, %v1119
    %v1123 = vmul.f32 %v1122, %v1121
    %v1124 = vmul.f32 0.5, %v1123
    %v1125 = vsub.f32 1.5, %v1124
    %v1126 = vmul.f32 %v1121, %v1125
    %vm1127 = vweird.f32 %v1119
    %vm1128 = vweird.f32 %v1121
    %vm1129 = vmor %vm1127, %vm1128
    %v1130 = vsel %vm1129, %v1121, %v1126
    %v1131 = vrsqrt.pop %v1120
    %v1132 = vmul.f32 %v1131, %v1120
    %v1133 = vmul.f32 %v1132, %v1131
    %v1134 = vmul.f32 0.5, %v1133
    %v1135 = vsub.f32 1.5, %v1134
    %v1136 = vmul.f32 %v1131, %v1135
    %vm1137 = vweird.f32 %v1120
    %vm1138 = vweird.f32 %v1131
    %vm1139 = vmor %vm1137, %vm1138
    %v1140 = vsel %vm1139, %v1131, %v1136
    %v1141 = vmul.f32 %v1117, %v1130
    %v1142 = vmul.f32 %v1118, %v1140
    %v1143 = vld [vmem:[%s4] sm:$0xff]
    %v1144 = vld [vmem:[%s4 + $0x8] sm:$0xff]
    %v1145 = vmul.f32 %v1109, %v1141
    %v1146 = vmul.f32 %v1110, %v1142
    %v1147 = vsub.f32 %v1143, %v1145
    %v1148 = vsub.f32 %v1144, %v1146
    %1150 = vset.pattern.permute.xlu0 0
    %1151 = vperm.xlu0 %1150, %v1141
    %v1152 = vpop.permute.xlu0 %1151
    %1155 = vset.pattern.permute.xlu0 0
    %1156 = vperm.xlu0 %1155, %v1142
    %v1157 = vpop.permute.xlu0 %1156
    %v1159 = vmul.f32 %v1073, %v1152
    %v1160 = vmul.f32 %v1074, %v1152
    %v1161 = vmul.f32 %v1075, %v1152
    %v1162 = vmul.f32 %v1076, %v1152
    %v1163 = vmul.f32 %v1077, %v1157
    %v1164 = vmul.f32 %v1078, %v1157
    %v1165 = vmul.f32 %v1079, %v1157
    %v1166 = vmul.f32 %v1080, %v1157
    %1168 = vset.pattern.permute.xlu0 0
    %1169 = vperm.xlu0 %1168, %v1147
    %v1170 = vpop.permute.xlu0 %1169
    %1173 = vset.pattern.permute.xlu0 0
    %1174 = vperm.xlu0 %1173, %v1148
    %v1175 = vpop.permute.xlu0 %1174
    %v1177 = vadd.f32 %v1159, %v1170
    %v1178 = vadd.f32 %v1160, %v1170
    %v1179 = vadd.f32 %v1161, %v1170
    %v1180 = vadd.f32 %v1162, %v1170
    %v1181 = vadd.f32 %v1163, %v1175
    %v1182 = vadd.f32 %v1164, %v1175
    %v1183 = vadd.f32 %v1165, %v1175
    %v1184 = vadd.f32 %v1166, %v1175
    %v1185 = vmax.f32 %v1177, 0.0
    %v1186 = vmax.f32 %v1178, 0.0
    %v1187 = vmax.f32 %v1179, 0.0
    %v1188 = vmax.f32 %v1180, 0.0
    %v1189 = vmax.f32 %v1181, 0.0
    %v1190 = vmax.f32 %v1182, 0.0
    %v1191 = vmax.f32 %v1183, 0.0
    %v1192 = vmax.f32 %v1184, 0.0
    %1193 = vrot.lane.b32.xlu0 %v1185, 17
    %v1194 = vpop.permute.xlu0 %1193
    %1195 = vrot.lane.b32.xlu0 %v1189, 17
    %v1196 = vpop.permute.xlu0 %1195
    %1197 = vrot.lane.b32.xlu0 %v1186, 17
    %v1198 = vpop.permute.xlu0 %1197
    %1199 = vrot.lane.b32.xlu0 %v1190, 17
    %v1200 = vpop.permute.xlu0 %1199
    %1201 = vrot.lane.b32.xlu0 %v1187, 17
    %v1202 = vpop.permute.xlu0 %1201
    %1203 = vrot.lane.b32.xlu0 %v1191, 17
    %v1204 = vpop.permute.xlu0 %1203
    %1205 = vrot.lane.b32.xlu0 %v1188, 17
    %v1206 = vpop.permute.xlu0 %1205
    %1207 = vrot.lane.b32.xlu0 %v1192, 17
    %v1208 = vpop.permute.xlu0 %1207
    %v1209 = vsel %vm62, %v1202, %v1206
    %v1210 = vsel %vm62, %v1204, %v1208
    %v1211 = vsel %vm62, %v1198, %v1202
    %v1212 = vsel %vm62, %v1200, %v1204
    %v1213 = vsel %vm62, %v1194, %v1198
    %v1214 = vsel %vm62, %v1196, %v1200
    %v1215 = vsel %vm62, %v1206, %v1194
    %v1216 = vsel %vm62, %v1208, %v1196
    %v1217 = vmul.f32 %v1215, %v69
    %v1218 = vmul.f32 %v1213, %v70
    %v1219 = vmul.f32 %v1211, %v71
    %v1220 = vmul.f32 %v1209, %v72
    %v1221 = vmul.f32 %v1216, %v69
    %v1222 = vmul.f32 %v1214, %v70
    %v1223 = vmul.f32 %v1212, %v71
    %v1224 = vmul.f32 %v1210, %v72
    %v1225 = vld [vmem:[%s5] sm:$0xf]
    %v1226 = vld [vmem:[%s5 + $0x4] sm:$0xf]
    %v1227 = vpack.c.bf16 %v1221, %v1217
    %v1228 = vpack.c.bf16 %v1222, %v1218
    %v1229 = vpack.c.bf16 %v1223, %v1219
    %v1230 = vpack.c.bf16 %v1224, %v1220
    %1231 = vrot.lane.b32.xlu0 %v1185, 16
    %v1232 = vpop.permute.xlu0 %1231
    %1233 = vrot.lane.b32.xlu0 %v1189, 16
    %v1234 = vpop.permute.xlu0 %1233
    %1235 = vrot.lane.b32.xlu0 %v1186, 16
    %v1236 = vpop.permute.xlu0 %1235
    %1237 = vrot.lane.b32.xlu0 %v1190, 16
    %v1238 = vpop.permute.xlu0 %1237
    %1239 = vrot.lane.b32.xlu0 %v1187, 16
    %v1240 = vpop.permute.xlu0 %1239
    %1241 = vrot.lane.b32.xlu0 %v1191, 16
    %v1242 = vpop.permute.xlu0 %1241
    %1243 = vrot.lane.b32.xlu0 %v1188, 16
    %v1244 = vpop.permute.xlu0 %1243
    %1245 = vrot.lane.b32.xlu0 %v1192, 16
    %v1246 = vpop.permute.xlu0 %1245
    %v1247 = vsel %vm95, %v1240, %v1244
    %v1248 = vsel %vm95, %v1242, %v1246
    %v1249 = vsel %vm95, %v1236, %v1240
    %v1250 = vsel %vm95, %v1238, %v1242
    %v1251 = vsel %vm95, %v1232, %v1236
    %v1252 = vsel %vm95, %v1234, %v1238
    %v1253 = vsel %vm95, %v1244, %v1232
    %v1254 = vsel %vm95, %v1246, %v1234
    %v1255 = vmul.f32 %v1253, %v103
    %v1256 = vmul.f32 %v1251, %v104
    %v1257 = vmul.f32 %v1249, %v105
    %v1258 = vmul.f32 %v1247, %v106
    %v1259 = vmul.f32 %v1254, %v103
    %v1260 = vmul.f32 %v1252, %v104
    %v1261 = vmul.f32 %v1250, %v105
    %v1262 = vmul.f32 %v1248, %v106
    %s1263 = scalar_lea.vmem %s5, 8
    %v1264 = vld [vmem:[%s1263] sm:$0xf]
    %v1265 = vld [vmem:[%s1263 + $0x4] sm:$0xf]
    %v1266 = vpack.c.bf16 %v1259, %v1255
    %v1267 = vpack.c.bf16 %v1260, %v1256
    %v1268 = vpack.c.bf16 %v1261, %v1257
    %v1269 = vpack.c.bf16 %v1262, %v1258
    %v1272 = vunpack.c.l.b16 %v1264
    %v1273 = vunpack.c.l.b16 %v1265
    %v1274 = vpack.c.b16 %v1273, %v1272
    %vm1275 = vcmask 130048
    %v1277 = vsel %vm1275, %v1274, 0
    %1279 = vmatpush.bf16.msra.mxu0 0
    %1280 = vmatpush.bf16.msra.mxu0 0
    %1281 = vmatpush.bf16.msra.mxu0 0
    %1282 = vmatpush.bf16.msra.mxu0 0
    %1283 = vmatpush.bf16.msra.mxu0 0
    %1284 = vmatpush.bf16.msra.mxu0 0
    %1285 = vmatpush.bf16.msra.mxu0 0
    %1286 = vmatpush.bf16.msra.mxu0 %v1266
    %1287 = vmatmul.bf16.gmra.mxu0 %v1277
    %v1288 = vpop.f32.mrf.mxu0
    %v1289 = vadd.f32 0.0, %v1288
    %v1290 = vpop.f32.mrf.mxu0
    %v1291 = vadd.f32 0.0, %v1290
    %1292 = vdwg.mxu0
    %1293 = vmatpush.bf16.msra.mxu0 0
    %1294 = vmatpush.bf16.msra.mxu0 0
    %1295 = vmatpush.bf16.msra.mxu0 0
    %1296 = vmatpush.bf16.msra.mxu0 0
    %1297 = vmatpush.bf16.msra.mxu0 0
    %1298 = vmatpush.bf16.msra.mxu0 0
    %1299 = vmatpush.bf16.msra.mxu0 0
    %1300 = vmatpush.bf16.msra.mxu0 %v1267
    %1301 = vmatmul.bf16.gmra.mxu0 %v1277
    %v1302 = vpop.f32.mrf.mxu0
    %v1303 = vadd.f32 0.0, %v1302
    %v1304 = vpop.f32.mrf.mxu0
    %v1305 = vadd.f32 0.0, %v1304
    %1306 = vdwg.mxu0
    %1307 = vmatpush.bf16.msra.mxu0 0
    %1308 = vmatpush.bf16.msra.mxu0 0
    %1309 = vmatpush.bf16.msra.mxu0 0
    %1310 = vmatpush.bf16.msra.mxu0 0
    %1311 = vmatpush.bf16.msra.mxu0 0
    %1312 = vmatpush.bf16.msra.mxu0 0
    %1313 = vmatpush.bf16.msra.mxu0 0
    %1314 = vmatpush.bf16.msra.mxu0 %v1268
    %1315 = vmatmul.bf16.gmra.mxu0 %v1277
    %v1316 = vpop.f32.mrf.mxu0
    %v1317 = vadd.f32 0.0, %v1316
    %v1318 = vpop.f32.mrf.mxu0
    %v1319 = vadd.f32 0.0, %v1318
    %1320 = vdwg.mxu0
    %1321 = vmatpush.bf16.msra.mxu0 0
    %1322 = vmatpush.bf16.msra.mxu0 0
    %1323 = vmatpush.bf16.msra.mxu0 0
    %1324 = vmatpush.bf16.msra.mxu0 0
    %1325 = vmatpush.bf16.msra.mxu0 0
    %1326 = vmatpush.bf16.msra.mxu0 0
    %1327 = vmatpush.bf16.msra.mxu0 0
    %1328 = vmatpush.bf16.msra.mxu0 %v1269
    %1329 = vmatmul.bf16.gmra.mxu0 %v1277
    %v1330 = vpop.f32.mrf.mxu0
    %v1331 = vadd.f32 0.0, %v1330
    %v1332 = vpop.f32.mrf.mxu0
    %v1333 = vadd.f32 0.0, %v1332
    %1334 = vdwg.mxu0
    %v1337 = vunpack.c.l.b16 %v1225
    %v1338 = vunpack.c.l.b16 %v1226
    %v1339 = vpack.c.b16 %v1338, %v1337
    %v1341 = vsel %vm1275, %v1339, 0
    %1343 = vmatpush.bf16.msra.mxu0 0
    %1344 = vmatpush.bf16.msra.mxu0 0
    %1345 = vmatpush.bf16.msra.mxu0 0
    %1346 = vmatpush.bf16.msra.mxu0 0
    %1347 = vmatpush.bf16.msra.mxu0 0
    %1348 = vmatpush.bf16.msra.mxu0 0
    %1349 = vmatpush.bf16.msra.mxu0 0
    %1350 = vmatpush.bf16.msra.mxu0 %v1227
    %1351 = vmatmul.bf16.gmra.mxu0 %v1341
    %v1352 = vpop.f32.mrf.mxu0
    %v1353 = vadd.f32 %v1289, %v1352
    %v1354 = vpop.f32.mrf.mxu0
    %v1355 = vadd.f32 %v1291, %v1354
    %1356 = vdwg.mxu0
    %1357 = vmatpush.bf16.msra.mxu0 0
    %1358 = vmatpush.bf16.msra.mxu0 0
    %1359 = vmatpush.bf16.msra.mxu0 0
    %1360 = vmatpush.bf16.msra.mxu0 0
    %1361 = vmatpush.bf16.msra.mxu0 0
    %1362 = vmatpush.bf16.msra.mxu0 0
    %1363 = vmatpush.bf16.msra.mxu0 0
    %1364 = vmatpush.bf16.msra.mxu0 %v1228
    %1365 = vmatmul.bf16.gmra.mxu0 %v1341
    %v1366 = vpop.f32.mrf.mxu0
    %v1367 = vadd.f32 %v1303, %v1366
    %v1368 = vpop.f32.mrf.mxu0
    %v1369 = vadd.f32 %v1305, %v1368
    %1370 = vdwg.mxu0
    %1371 = vmatpush.bf16.msra.mxu0 0
    %1372 = vmatpush.bf16.msra.mxu0 0
    %1373 = vmatpush.bf16.msra.mxu0 0
    %1374 = vmatpush.bf16.msra.mxu0 0
    %1375 = vmatpush.bf16.msra.mxu0 0
    %1376 = vmatpush.bf16.msra.mxu0 0
    %1377 = vmatpush.bf16.msra.mxu0 0
    %1378 = vmatpush.bf16.msra.mxu0 %v1229
    %1379 = vmatmul.bf16.gmra.mxu0 %v1341
    %v1380 = vpop.f32.mrf.mxu0
    %v1381 = vadd.f32 %v1317, %v1380
    %v1382 = vpop.f32.mrf.mxu0
    %v1383 = vadd.f32 %v1319, %v1382
    %1384 = vdwg.mxu0
    %1385 = vmatpush.bf16.msra.mxu0 0
    %1386 = vmatpush.bf16.msra.mxu0 0
    %1387 = vmatpush.bf16.msra.mxu0 0
    %1388 = vmatpush.bf16.msra.mxu0 0
    %1389 = vmatpush.bf16.msra.mxu0 0
    %1390 = vmatpush.bf16.msra.mxu0 0
    %1391 = vmatpush.bf16.msra.mxu0 0
    %1392 = vmatpush.bf16.msra.mxu0 %v1230
    %1393 = vmatmul.bf16.gmra.mxu0 %v1341
    %v1394 = vpop.f32.mrf.mxu0
    %v1395 = vadd.f32 %v1331, %v1394
    %v1396 = vpop.f32.mrf.mxu0
    %v1397 = vadd.f32 %v1333, %v1396
    %1398 = vdwg.mxu0
    %1399 = vrot.lane.b32.xlu0 %v1185, 15
    %v1400 = vpop.permute.xlu0 %1399
    %1401 = vrot.lane.b32.xlu0 %v1189, 15
    %v1402 = vpop.permute.xlu0 %1401
    %1403 = vrot.lane.b32.xlu0 %v1186, 15
    %v1404 = vpop.permute.xlu0 %1403
    %1405 = vrot.lane.b32.xlu0 %v1190, 15
    %v1406 = vpop.permute.xlu0 %1405
    %1407 = vrot.lane.b32.xlu0 %v1187, 15
    %v1408 = vpop.permute.xlu0 %1407
    %1409 = vrot.lane.b32.xlu0 %v1191, 15
    %v1410 = vpop.permute.xlu0 %1409
    %1411 = vrot.lane.b32.xlu0 %v1188, 15
    %v1412 = vpop.permute.xlu0 %1411
    %1413 = vrot.lane.b32.xlu0 %v1192, 15
    %v1414 = vpop.permute.xlu0 %1413
    %v1415 = vsel %vm284, %v1408, %v1412
    %v1416 = vsel %vm284, %v1410, %v1414
    %v1417 = vsel %vm284, %v1404, %v1408
    %v1418 = vsel %vm284, %v1406, %v1410
    %v1419 = vsel %vm284, %v1400, %v1404
    %v1420 = vsel %vm284, %v1402, %v1406
    %v1421 = vsel %vm284, %v1412, %v1400
    %v1422 = vsel %vm284, %v1414, %v1402
    %v1423 = vmul.f32 %v1421, %v292
    %v1424 = vmul.f32 %v1419, %v293
    %v1425 = vmul.f32 %v1417, %v294
    %v1426 = vmul.f32 %v1415, %v295
    %v1427 = vmul.f32 %v1422, %v292
    %v1428 = vmul.f32 %v1420, %v293
    %v1429 = vmul.f32 %v1418, %v294
    %v1430 = vmul.f32 %v1416, %v295
    %s1431 = scalar_lea.vmem %s5, 16
    %v1432 = vld [vmem:[%s1431] sm:$0xf]
    %v1433 = vld [vmem:[%s1431 + $0x4] sm:$0xf]
    %v1434 = vpack.c.bf16 %v1427, %v1423
    %v1435 = vpack.c.bf16 %v1428, %v1424
    %v1436 = vpack.c.bf16 %v1429, %v1425
    %v1437 = vpack.c.bf16 %v1430, %v1426
    %v1440 = vunpack.c.l.b16 %v1432
    %v1441 = vunpack.c.l.b16 %v1433
    %v1442 = vpack.c.b16 %v1441, %v1440
    %v1444 = vsel %vm1275, %v1442, 0
    %1446 = vmatpush.bf16.msra.mxu0 0
    %1447 = vmatpush.bf16.msra.mxu0 0
    %1448 = vmatpush.bf16.msra.mxu0 0
    %1449 = vmatpush.bf16.msra.mxu0 0
    %1450 = vmatpush.bf16.msra.mxu0 0
    %1451 = vmatpush.bf16.msra.mxu0 0
    %1452 = vmatpush.bf16.msra.mxu0 0
    %1453 = vmatpush.bf16.msra.mxu0 %v1434
    %1454 = vmatmul.bf16.gmra.mxu0 %v1444
    %v1455 = vpop.f32.mrf.mxu0
    %v1456 = vadd.f32 0.0, %v1455
    %v1457 = vpop.f32.mrf.mxu0
    %v1458 = vadd.f32 0.0, %v1457
    %1459 = vdwg.mxu0
    %1460 = vmatpush.bf16.msra.mxu0 0
    %1461 = vmatpush.bf16.msra.mxu0 0
    %1462 = vmatpush.bf16.msra.mxu0 0
    %1463 = vmatpush.bf16.msra.mxu0 0
    %1464 = vmatpush.bf16.msra.mxu0 0
    %1465 = vmatpush.bf16.msra.mxu0 0
    %1466 = vmatpush.bf16.msra.mxu0 0
    %1467 = vmatpush.bf16.msra.mxu0 %v1435
    %1468 = vmatmul.bf16.gmra.mxu0 %v1444
    %v1469 = vpop.f32.mrf.mxu0
    %v1470 = vadd.f32 0.0, %v1469
    %v1471 = vpop.f32.mrf.mxu0
    %v1472 = vadd.f32 0.0, %v1471
    %1473 = vdwg.mxu0
    %1474 = vmatpush.bf16.msra.mxu0 0
    %1475 = vmatpush.bf16.msra.mxu0 0
    %1476 = vmatpush.bf16.msra.mxu0 0
    %1477 = vmatpush.bf16.msra.mxu0 0
    %1478 = vmatpush.bf16.msra.mxu0 0
    %1479 = vmatpush.bf16.msra.mxu0 0
    %1480 = vmatpush.bf16.msra.mxu0 0
    %1481 = vmatpush.bf16.msra.mxu0 %v1436
    %1482 = vmatmul.bf16.gmra.mxu0 %v1444
    %v1483 = vpop.f32.mrf.mxu0
    %v1484 = vadd.f32 0.0, %v1483
    %v1485 = vpop.f32.mrf.mxu0
    %v1486 = vadd.f32 0.0, %v1485
    %1487 = vdwg.mxu0
    %1488 = vmatpush.bf16.msra.mxu0 0
    %1489 = vmatpush.bf16.msra.mxu0 0
    %1490 = vmatpush.bf16.msra.mxu0 0
    %1491 = vmatpush.bf16.msra.mxu0 0
    %1492 = vmatpush.bf16.msra.mxu0 0
    %1493 = vmatpush.bf16.msra.mxu0 0
    %1494 = vmatpush.bf16.msra.mxu0 0
    %1495 = vmatpush.bf16.msra.mxu0 %v1437
    %1496 = vmatmul.bf16.gmra.mxu0 %v1444
    %v1497 = vpop.f32.mrf.mxu0
    %v1498 = vadd.f32 0.0, %v1497
    %v1499 = vpop.f32.mrf.mxu0
    %v1500 = vadd.f32 0.0, %v1499
    %1501 = vdwg.mxu0
    %v1502 = vadd.f32 %v1353, %v1456
    %v1503 = vadd.f32 %v1367, %v1470
    %v1504 = vadd.f32 %v1381, %v1484
    %v1505 = vadd.f32 %v1395, %v1498
    %v1506 = vadd.f32 %v1355, %v1458
    %v1507 = vadd.f32 %v1369, %v1472
    %v1508 = vadd.f32 %v1383, %v1486
    %v1509 = vadd.f32 %v1397, %v1500
    %1510 = vrot.lane.b32.xlu0 %v1185, 1
    %v1511 = vpop.permute.xlu0 %1510
    %1512 = vrot.lane.b32.xlu0 %v1189, 1
    %v1513 = vpop.permute.xlu0 %1512
    %1514 = vrot.lane.b32.xlu0 %v1186, 1
    %v1515 = vpop.permute.xlu0 %1514
    %1516 = vrot.lane.b32.xlu0 %v1190, 1
    %v1517 = vpop.permute.xlu0 %1516
    %1518 = vrot.lane.b32.xlu0 %v1187, 1
    %v1519 = vpop.permute.xlu0 %1518
    %1520 = vrot.lane.b32.xlu0 %v1191, 1
    %v1521 = vpop.permute.xlu0 %1520
    %1522 = vrot.lane.b32.xlu0 %v1188, 1
    %v1523 = vpop.permute.xlu0 %1522
    %1524 = vrot.lane.b32.xlu0 %v1192, 1
    %v1525 = vpop.permute.xlu0 %1524
    %v1526 = vsel %vm403, %v1519, %v1523
    %v1527 = vsel %vm403, %v1521, %v1525
    %v1528 = vsel %vm403, %v1515, %v1519
    %v1529 = vsel %vm403, %v1517, %v1521
    %v1530 = vsel %vm403, %v1511, %v1515
    %v1531 = vsel %vm403, %v1513, %v1517
    %v1532 = vsel %vm403, %v1523, %v1511
    %v1533 = vsel %vm403, %v1525, %v1513
    %v1534 = vmul.f32 %v1532, %v411
    %v1535 = vmul.f32 %v1530, %v412
    %v1536 = vmul.f32 %v1528, %v413
    %v1537 = vmul.f32 %v1526, %v414
    %v1538 = vmul.f32 %v1533, %v411
    %v1539 = vmul.f32 %v1531, %v412
    %v1540 = vmul.f32 %v1529, %v413
    %v1541 = vmul.f32 %v1527, %v414
    %s1542 = scalar_lea.vmem %s5, 24
    %v1543 = vld [vmem:[%s1542] sm:$0xf]
    %v1544 = vld [vmem:[%s1542 + $0x4] sm:$0xf]
    %v1545 = vpack.c.bf16 %v1538, %v1534
    %v1546 = vpack.c.bf16 %v1539, %v1535
    %v1547 = vpack.c.bf16 %v1540, %v1536
    %v1548 = vpack.c.bf16 %v1541, %v1537
    %v1551 = vunpack.c.l.b16 %v1543
    %v1552 = vunpack.c.l.b16 %v1544
    %v1553 = vpack.c.b16 %v1552, %v1551
    %v1555 = vsel %vm1275, %v1553, 0
    %1557 = vmatpush.bf16.msra.mxu0 0
    %1558 = vmatpush.bf16.msra.mxu0 0
    %1559 = vmatpush.bf16.msra.mxu0 0
    %1560 = vmatpush.bf16.msra.mxu0 0
    %1561 = vmatpush.bf16.msra.mxu0 0
    %1562 = vmatpush.bf16.msra.mxu0 0
    %1563 = vmatpush.bf16.msra.mxu0 0
    %1564 = vmatpush.bf16.msra.mxu0 %v1545
    %1565 = vmatmul.bf16.gmra.mxu0 %v1555
    %v1566 = vpop.f32.mrf.mxu0
    %v1567 = vadd.f32 0.0, %v1566
    %v1568 = vpop.f32.mrf.mxu0
    %v1569 = vadd.f32 0.0, %v1568
    %1570 = vdwg.mxu0
    %1571 = vmatpush.bf16.msra.mxu0 0
    %1572 = vmatpush.bf16.msra.mxu0 0
    %1573 = vmatpush.bf16.msra.mxu0 0
    %1574 = vmatpush.bf16.msra.mxu0 0
    %1575 = vmatpush.bf16.msra.mxu0 0
    %1576 = vmatpush.bf16.msra.mxu0 0
    %1577 = vmatpush.bf16.msra.mxu0 0
    %1578 = vmatpush.bf16.msra.mxu0 %v1546
    %1579 = vmatmul.bf16.gmra.mxu0 %v1555
    %v1580 = vpop.f32.mrf.mxu0
    %v1581 = vadd.f32 0.0, %v1580
    %v1582 = vpop.f32.mrf.mxu0
    %v1583 = vadd.f32 0.0, %v1582
    %1584 = vdwg.mxu0
    %1585 = vmatpush.bf16.msra.mxu0 0
    %1586 = vmatpush.bf16.msra.mxu0 0
    %1587 = vmatpush.bf16.msra.mxu0 0
    %1588 = vmatpush.bf16.msra.mxu0 0
    %1589 = vmatpush.bf16.msra.mxu0 0
    %1590 = vmatpush.bf16.msra.mxu0 0
    %1591 = vmatpush.bf16.msra.mxu0 0
    %1592 = vmatpush.bf16.msra.mxu0 %v1547
    %1593 = vmatmul.bf16.gmra.mxu0 %v1555
    %v1594 = vpop.f32.mrf.mxu0
    %v1595 = vadd.f32 0.0, %v1594
    %v1596 = vpop.f32.mrf.mxu0
    %v1597 = vadd.f32 0.0, %v1596
    %1598 = vdwg.mxu0
    %1599 = vmatpush.bf16.msra.mxu0 0
    %1600 = vmatpush.bf16.msra.mxu0 0
    %1601 = vmatpush.bf16.msra.mxu0 0
    %1602 = vmatpush.bf16.msra.mxu0 0
    %1603 = vmatpush.bf16.msra.mxu0 0
    %1604 = vmatpush.bf16.msra.mxu0 0
    %1605 = vmatpush.bf16.msra.mxu0 0
    %1606 = vmatpush.bf16.msra.mxu0 %v1548
    %1607 = vmatmul.bf16.gmra.mxu0 %v1555
    %v1608 = vpop.f32.mrf.mxu0
    %v1609 = vadd.f32 0.0, %v1608
    %v1610 = vpop.f32.mrf.mxu0
    %v1611 = vadd.f32 0.0, %v1610
    %1612 = vdwg.mxu0
    %v1613 = vadd.f32 %v1502, %v1567
    %v1614 = vadd.f32 %v1503, %v1581
    %v1615 = vadd.f32 %v1504, %v1595
    %v1616 = vadd.f32 %v1505, %v1609
    %v1617 = vadd.f32 %v1506, %v1569
    %v1618 = vadd.f32 %v1507, %v1583
    %v1619 = vadd.f32 %v1508, %v1597
    %v1620 = vadd.f32 %v1509, %v1611
    %s1621 = scalar_lea.vmem %s5, 32
    %v1622 = vld [vmem:[%s1621] sm:$0xf]
    %v1623 = vld [vmem:[%s1621 + $0x4] sm:$0xf]
    %v1624 = vpack.c.bf16 %v1189, %v1185
    %v1625 = vpack.c.bf16 %v1190, %v1186
    %v1626 = vpack.c.bf16 %v1191, %v1187
    %v1627 = vpack.c.bf16 %v1192, %v1188
    %v1630 = vunpack.c.l.b16 %v1622
    %v1631 = vunpack.c.l.b16 %v1623
    %v1632 = vpack.c.b16 %v1631, %v1630
    %v1634 = vsel %vm1275, %v1632, 0
    %1636 = vmatpush.bf16.msra.mxu0 0
    %1637 = vmatpush.bf16.msra.mxu0 0
    %1638 = vmatpush.bf16.msra.mxu0 0
    %1639 = vmatpush.bf16.msra.mxu0 0
    %1640 = vmatpush.bf16.msra.mxu0 0
    %1641 = vmatpush.bf16.msra.mxu0 0
    %1642 = vmatpush.bf16.msra.mxu0 0
    %1643 = vmatpush.bf16.msra.mxu0 %v1624
    %1644 = vmatmul.bf16.gmra.mxu0 %v1634
    %v1645 = vpop.f32.mrf.mxu0
    %v1646 = vadd.f32 0.0, %v1645
    %v1647 = vpop.f32.mrf.mxu0
    %v1648 = vadd.f32 0.0, %v1647
    %1649 = vdwg.mxu0
    %1650 = vmatpush.bf16.msra.mxu0 0
    %1651 = vmatpush.bf16.msra.mxu0 0
    %1652 = vmatpush.bf16.msra.mxu0 0
    %1653 = vmatpush.bf16.msra.mxu0 0
    %1654 = vmatpush.bf16.msra.mxu0 0
    %1655 = vmatpush.bf16.msra.mxu0 0
    %1656 = vmatpush.bf16.msra.mxu0 0
    %1657 = vmatpush.bf16.msra.mxu0 %v1625
    %1658 = vmatmul.bf16.gmra.mxu0 %v1634
    %v1659 = vpop.f32.mrf.mxu0
    %v1660 = vadd.f32 0.0, %v1659
    %v1661 = vpop.f32.mrf.mxu0
    %v1662 = vadd.f32 0.0, %v1661
    %1663 = vdwg.mxu0
    %1664 = vmatpush.bf16.msra.mxu0 0
    %1665 = vmatpush.bf16.msra.mxu0 0
    %1666 = vmatpush.bf16.msra.mxu0 0
    %1667 = vmatpush.bf16.msra.mxu0 0
    %1668 = vmatpush.bf16.msra.mxu0 0
    %1669 = vmatpush.bf16.msra.mxu0 0
    %1670 = vmatpush.bf16.msra.mxu0 0
    %1671 = vmatpush.bf16.msra.mxu0 %v1626
    %1672 = vmatmul.bf16.gmra.mxu0 %v1634
    %v1673 = vpop.f32.mrf.mxu0
    %v1674 = vadd.f32 0.0, %v1673
    %v1675 = vpop.f32.mrf.mxu0
    %v1676 = vadd.f32 0.0, %v1675
    %1677 = vdwg.mxu0
    %1678 = vmatpush.bf16.msra.mxu0 0
    %1679 = vmatpush.bf16.msra.mxu0 0
    %1680 = vmatpush.bf16.msra.mxu0 0
    %1681 = vmatpush.bf16.msra.mxu0 0
    %1682 = vmatpush.bf16.msra.mxu0 0
    %1683 = vmatpush.bf16.msra.mxu0 0
    %1684 = vmatpush.bf16.msra.mxu0 0
    %1685 = vmatpush.bf16.msra.mxu0 %v1627
    %1686 = vmatmul.bf16.gmra.mxu0 %v1634
    %v1687 = vpop.f32.mrf.mxu0
    %v1688 = vadd.f32 0.0, %v1687
    %v1689 = vpop.f32.mrf.mxu0
    %v1690 = vadd.f32 0.0, %v1689
    %1691 = vdwg.mxu0
    %v1692 = vadd.f32 %v1613, %v1646
    %v1693 = vadd.f32 %v1614, %v1660
    %v1694 = vadd.f32 %v1615, %v1674
    %v1695 = vadd.f32 %v1616, %v1688
    %v1696 = vadd.f32 %v1617, %v1648
    %v1697 = vadd.f32 %v1618, %v1662
    %v1698 = vadd.f32 %v1619, %v1676
    %v1699 = vadd.f32 %v1620, %v1690
    %1700 = vrot.lane.b32.xlu0 %v1185, 127
    %v1701 = vpop.permute.xlu0 %1700
    %1702 = vrot.lane.b32.xlu0 %v1189, 127
    %v1703 = vpop.permute.xlu0 %1702
    %1704 = vrot.lane.b32.xlu0 %v1186, 127
    %v1705 = vpop.permute.xlu0 %1704
    %1706 = vrot.lane.b32.xlu0 %v1190, 127
    %v1707 = vpop.permute.xlu0 %1706
    %1708 = vrot.lane.b32.xlu0 %v1187, 127
    %v1709 = vpop.permute.xlu0 %1708
    %1710 = vrot.lane.b32.xlu0 %v1191, 127
    %v1711 = vpop.permute.xlu0 %1710
    %1712 = vrot.lane.b32.xlu0 %v1188, 127
    %v1713 = vpop.permute.xlu0 %1712
    %1714 = vrot.lane.b32.xlu0 %v1192, 127
    %v1715 = vpop.permute.xlu0 %1714
    %v1716 = vsel %vm613, %v1709, %v1713
    %v1717 = vsel %vm613, %v1711, %v1715
    %v1718 = vsel %vm613, %v1705, %v1709
    %v1719 = vsel %vm613, %v1707, %v1711
    %v1720 = vsel %vm613, %v1701, %v1705
    %v1721 = vsel %vm613, %v1703, %v1707
    %v1722 = vsel %vm613, %v1713, %v1701
    %v1723 = vsel %vm613, %v1715, %v1703
    %v1724 = vmul.f32 %v1720, %v621
    %v1725 = vmul.f32 %v1718, %v622
    %v1726 = vmul.f32 %v1716, %v623
    %v1727 = vmul.f32 %v1722, %v624
    %v1728 = vmul.f32 %v1721, %v621
    %v1729 = vmul.f32 %v1719, %v622
    %v1730 = vmul.f32 %v1717, %v623
    %v1731 = vmul.f32 %v1723, %v624
    %s1732 = scalar_lea.vmem %s5, 40
    %v1733 = vld [vmem:[%s1732] sm:$0xf]
    %v1734 = vld [vmem:[%s1732 + $0x4] sm:$0xf]
    %v1735 = vpack.c.bf16 %v1728, %v1724
    %v1736 = vpack.c.bf16 %v1729, %v1725
    %v1737 = vpack.c.bf16 %v1730, %v1726
    %v1738 = vpack.c.bf16 %v1731, %v1727
    %v1741 = vunpack.c.l.b16 %v1733
    %v1742 = vunpack.c.l.b16 %v1734
    %v1743 = vpack.c.b16 %v1742, %v1741
    %v1745 = vsel %vm1275, %v1743, 0
    %1747 = vmatpush.bf16.msra.mxu0 0
    %1748 = vmatpush.bf16.msra.mxu0 0
    %1749 = vmatpush.bf16.msra.mxu0 0
    %1750 = vmatpush.bf16.msra.mxu0 0
    %1751 = vmatpush.bf16.msra.mxu0 0
    %1752 = vmatpush.bf16.msra.mxu0 0
    %1753 = vmatpush.bf16.msra.mxu0 0
    %1754 = vmatpush.bf16.msra.mxu0 %v1735
    %1755 = vmatmul.bf16.gmra.mxu0 %v1745
    %v1756 = vpop.f32.mrf.mxu0
    %v1757 = vadd.f32 0.0, %v1756
    %v1758 = vpop.f32.mrf.mxu0
    %v1759 = vadd.f32 0.0, %v1758
    %1760 = vdwg.mxu0
    %1761 = vmatpush.bf16.msra.mxu0 0
    %1762 = vmatpush.bf16.msra.mxu0 0
    %1763 = vmatpush.bf16.msra.mxu0 0
    %1764 = vmatpush.bf16.msra.mxu0 0
    %1765 = vmatpush.bf16.msra.mxu0 0
    %1766 = vmatpush.bf16.msra.mxu0 0
    %1767 = vmatpush.bf16.msra.mxu0 0
    %1768 = vmatpush.bf16.msra.mxu0 %v1736
    %1769 = vmatmul.bf16.gmra.mxu0 %v1745
    %v1770 = vpop.f32.mrf.mxu0
    %v1771 = vadd.f32 0.0, %v1770
    %v1772 = vpop.f32.mrf.mxu0
    %v1773 = vadd.f32 0.0, %v1772
    %1774 = vdwg.mxu0
    %1775 = vmatpush.bf16.msra.mxu0 0
    %1776 = vmatpush.bf16.msra.mxu0 0
    %1777 = vmatpush.bf16.msra.mxu0 0
    %1778 = vmatpush.bf16.msra.mxu0 0
    %1779 = vmatpush.bf16.msra.mxu0 0
    %1780 = vmatpush.bf16.msra.mxu0 0
    %1781 = vmatpush.bf16.msra.mxu0 0
    %1782 = vmatpush.bf16.msra.mxu0 %v1737
    %1783 = vmatmul.bf16.gmra.mxu0 %v1745
    %v1784 = vpop.f32.mrf.mxu0
    %v1785 = vadd.f32 0.0, %v1784
    %v1786 = vpop.f32.mrf.mxu0
    %v1787 = vadd.f32 0.0, %v1786
    %1788 = vdwg.mxu0
    %1789 = vmatpush.bf16.msra.mxu0 0
    %1790 = vmatpush.bf16.msra.mxu0 0
    %1791 = vmatpush.bf16.msra.mxu0 0
    %1792 = vmatpush.bf16.msra.mxu0 0
    %1793 = vmatpush.bf16.msra.mxu0 0
    %1794 = vmatpush.bf16.msra.mxu0 0
    %1795 = vmatpush.bf16.msra.mxu0 0
    %1796 = vmatpush.bf16.msra.mxu0 %v1738
    %1797 = vmatmul.bf16.gmra.mxu0 %v1745
    %v1798 = vpop.f32.mrf.mxu0
    %v1799 = vadd.f32 0.0, %v1798
    %v1800 = vpop.f32.mrf.mxu0
    %v1801 = vadd.f32 0.0, %v1800
    %1802 = vdwg.mxu0
    %v1803 = vadd.f32 %v1692, %v1757
    %v1804 = vadd.f32 %v1693, %v1771
    %v1805 = vadd.f32 %v1694, %v1785
    %v1806 = vadd.f32 %v1695, %v1799
    %v1807 = vadd.f32 %v1696, %v1759
    %v1808 = vadd.f32 %v1697, %v1773
    %v1809 = vadd.f32 %v1698, %v1787
    %v1810 = vadd.f32 %v1699, %v1801
    %1811 = vrot.lane.b32.xlu0 %v1185, 113
    %v1812 = vpop.permute.xlu0 %1811
    %1813 = vrot.lane.b32.xlu0 %v1189, 113
    %v1814 = vpop.permute.xlu0 %1813
    %1815 = vrot.lane.b32.xlu0 %v1186, 113
    %v1816 = vpop.permute.xlu0 %1815
    %1817 = vrot.lane.b32.xlu0 %v1190, 113
    %v1818 = vpop.permute.xlu0 %1817
    %1819 = vrot.lane.b32.xlu0 %v1187, 113
    %v1820 = vpop.permute.xlu0 %1819
    %1821 = vrot.lane.b32.xlu0 %v1191, 113
    %v1822 = vpop.permute.xlu0 %1821
    %1823 = vrot.lane.b32.xlu0 %v1188, 113
    %v1824 = vpop.permute.xlu0 %1823
    %1825 = vrot.lane.b32.xlu0 %v1192, 113
    %v1826 = vpop.permute.xlu0 %1825
    %v1827 = vsel %vm732, %v1820, %v1824
    %v1828 = vsel %vm732, %v1822, %v1826
    %v1829 = vsel %vm732, %v1816, %v1820
    %v1830 = vsel %vm732, %v1818, %v1822
    %v1831 = vsel %vm732, %v1812, %v1816
    %v1832 = vsel %vm732, %v1814, %v1818
    %v1833 = vsel %vm732, %v1824, %v1812
    %v1834 = vsel %vm732, %v1826, %v1814
    %v1835 = vmul.f32 %v1831, %v740
    %v1836 = vmul.f32 %v1829, %v741
    %v1837 = vmul.f32 %v1827, %v742
    %v1838 = vmul.f32 %v1833, %v743
    %v1839 = vmul.f32 %v1832, %v740
    %v1840 = vmul.f32 %v1830, %v741
    %v1841 = vmul.f32 %v1828, %v742
    %v1842 = vmul.f32 %v1834, %v743
    %s1843 = scalar_lea.vmem %s5, 48
    %v1844 = vld [vmem:[%s1843] sm:$0xf]
    %v1845 = vld [vmem:[%s1843 + $0x4] sm:$0xf]
    %v1846 = vpack.c.bf16 %v1839, %v1835
    %v1847 = vpack.c.bf16 %v1840, %v1836
    %v1848 = vpack.c.bf16 %v1841, %v1837
    %v1849 = vpack.c.bf16 %v1842, %v1838
    %v1852 = vunpack.c.l.b16 %v1844
    %v1853 = vunpack.c.l.b16 %v1845
    %v1854 = vpack.c.b16 %v1853, %v1852
    %v1856 = vsel %vm1275, %v1854, 0
    %1858 = vmatpush.bf16.msra.mxu0 0
    %1859 = vmatpush.bf16.msra.mxu0 0
    %1860 = vmatpush.bf16.msra.mxu0 0
    %1861 = vmatpush.bf16.msra.mxu0 0
    %1862 = vmatpush.bf16.msra.mxu0 0
    %1863 = vmatpush.bf16.msra.mxu0 0
    %1864 = vmatpush.bf16.msra.mxu0 0
    %1865 = vmatpush.bf16.msra.mxu0 %v1846
    %1866 = vmatmul.bf16.gmra.mxu0 %v1856
    %v1867 = vpop.f32.mrf.mxu0
    %v1868 = vadd.f32 0.0, %v1867
    %v1869 = vpop.f32.mrf.mxu0
    %v1870 = vadd.f32 0.0, %v1869
    %1871 = vdwg.mxu0
    %1872 = vmatpush.bf16.msra.mxu0 0
    %1873 = vmatpush.bf16.msra.mxu0 0
    %1874 = vmatpush.bf16.msra.mxu0 0
    %1875 = vmatpush.bf16.msra.mxu0 0
    %1876 = vmatpush.bf16.msra.mxu0 0
    %1877 = vmatpush.bf16.msra.mxu0 0
    %1878 = vmatpush.bf16.msra.mxu0 0
    %1879 = vmatpush.bf16.msra.mxu0 %v1847
    %1880 = vmatmul.bf16.gmra.mxu0 %v1856
    %v1881 = vpop.f32.mrf.mxu0
    %v1882 = vadd.f32 0.0, %v1881
    %v1883 = vpop.f32.mrf.mxu0
    %v1884 = vadd.f32 0.0, %v1883
    %1885 = vdwg.mxu0
    %1886 = vmatpush.bf16.msra.mxu0 0
    %1887 = vmatpush.bf16.msra.mxu0 0
    %1888 = vmatpush.bf16.msra.mxu0 0
    %1889 = vmatpush.bf16.msra.mxu0 0
    %1890 = vmatpush.bf16.msra.mxu0 0
    %1891 = vmatpush.bf16.msra.mxu0 0
    %1892 = vmatpush.bf16.msra.mxu0 0
    %1893 = vmatpush.bf16.msra.mxu0 %v1848
    %1894 = vmatmul.bf16.gmra.mxu0 %v1856
    %v1895 = vpop.f32.mrf.mxu0
    %v1896 = vadd.f32 0.0, %v1895
    %v1897 = vpop.f32.mrf.mxu0
    %v1898 = vadd.f32 0.0, %v1897
    %1899 = vdwg.mxu0
    %1900 = vmatpush.bf16.msra.mxu0 0
    %1901 = vmatpush.bf16.msra.mxu0 0
    %1902 = vmatpush.bf16.msra.mxu0 0
    %1903 = vmatpush.bf16.msra.mxu0 0
    %1904 = vmatpush.bf16.msra.mxu0 0
    %1905 = vmatpush.bf16.msra.mxu0 0
    %1906 = vmatpush.bf16.msra.mxu0 0
    %1907 = vmatpush.bf16.msra.mxu0 %v1849
    %1908 = vmatmul.bf16.gmra.mxu0 %v1856
    %v1909 = vpop.f32.mrf.mxu0
    %v1910 = vadd.f32 0.0, %v1909
    %v1911 = vpop.f32.mrf.mxu0
    %v1912 = vadd.f32 0.0, %v1911
    %1913 = vdwg.mxu0
    %v1914 = vadd.f32 %v1803, %v1868
    %v1915 = vadd.f32 %v1804, %v1882
    %v1916 = vadd.f32 %v1805, %v1896
    %v1917 = vadd.f32 %v1806, %v1910
    %v1918 = vadd.f32 %v1807, %v1870
    %v1919 = vadd.f32 %v1808, %v1884
    %v1920 = vadd.f32 %v1809, %v1898
    %v1921 = vadd.f32 %v1810, %v1912
    %1922 = vrot.lane.b32.xlu0 %v1185, 112
    %v1923 = vpop.permute.xlu0 %1922
    %1924 = vrot.lane.b32.xlu0 %v1189, 112
    %v1925 = vpop.permute.xlu0 %1924
    %1926 = vrot.lane.b32.xlu0 %v1186, 112
    %v1927 = vpop.permute.xlu0 %1926
    %1928 = vrot.lane.b32.xlu0 %v1190, 112
    %v1929 = vpop.permute.xlu0 %1928
    %1930 = vrot.lane.b32.xlu0 %v1187, 112
    %v1931 = vpop.permute.xlu0 %1930
    %1932 = vrot.lane.b32.xlu0 %v1191, 112
    %v1933 = vpop.permute.xlu0 %1932
    %1934 = vrot.lane.b32.xlu0 %v1188, 112
    %v1935 = vpop.permute.xlu0 %1934
    %1936 = vrot.lane.b32.xlu0 %v1192, 112
    %v1937 = vpop.permute.xlu0 %1936
    %v1938 = vsel %vm851, %v1931, %v1935
    %v1939 = vsel %vm851, %v1933, %v1937
    %v1940 = vsel %vm851, %v1927, %v1931
    %v1941 = vsel %vm851, %v1929, %v1933
    %v1942 = vsel %vm851, %v1923, %v1927
    %v1943 = vsel %vm851, %v1925, %v1929
    %v1944 = vsel %vm851, %v1935, %v1923
    %v1945 = vsel %vm851, %v1937, %v1925
    %v1946 = vmul.f32 %v1942, %v859
    %v1947 = vmul.f32 %v1940, %v860
    %v1948 = vmul.f32 %v1938, %v861
    %v1949 = vmul.f32 %v1944, %v862
    %v1950 = vmul.f32 %v1943, %v859
    %v1951 = vmul.f32 %v1941, %v860
    %v1952 = vmul.f32 %v1939, %v861
    %v1953 = vmul.f32 %v1945, %v862
    %s1954 = scalar_lea.vmem %s5, 56
    %v1955 = vld [vmem:[%s1954] sm:$0xf]
    %v1956 = vld [vmem:[%s1954 + $0x4] sm:$0xf]
    %v1957 = vpack.c.bf16 %v1950, %v1946
    %v1958 = vpack.c.bf16 %v1951, %v1947
    %v1959 = vpack.c.bf16 %v1952, %v1948
    %v1960 = vpack.c.bf16 %v1953, %v1949
    %v1963 = vunpack.c.l.b16 %v1955
    %v1964 = vunpack.c.l.b16 %v1956
    %v1965 = vpack.c.b16 %v1964, %v1963
    %v1967 = vsel %vm1275, %v1965, 0
    %1969 = vmatpush.bf16.msra.mxu0 0
    %1970 = vmatpush.bf16.msra.mxu0 0
    %1971 = vmatpush.bf16.msra.mxu0 0
    %1972 = vmatpush.bf16.msra.mxu0 0
    %1973 = vmatpush.bf16.msra.mxu0 0
    %1974 = vmatpush.bf16.msra.mxu0 0
    %1975 = vmatpush.bf16.msra.mxu0 0
    %1976 = vmatpush.bf16.msra.mxu0 %v1957
    %1977 = vmatmul.bf16.gmra.mxu0 %v1967
    %v1978 = vpop.f32.mrf.mxu0
    %v1979 = vadd.f32 0.0, %v1978
    %v1980 = vpop.f32.mrf.mxu0
    %v1981 = vadd.f32 0.0, %v1980
    %1982 = vdwg.mxu0
    %1983 = vmatpush.bf16.msra.mxu0 0
    %1984 = vmatpush.bf16.msra.mxu0 0
    %1985 = vmatpush.bf16.msra.mxu0 0
    %1986 = vmatpush.bf16.msra.mxu0 0
    %1987 = vmatpush.bf16.msra.mxu0 0
    %1988 = vmatpush.bf16.msra.mxu0 0
    %1989 = vmatpush.bf16.msra.mxu0 0
    %1990 = vmatpush.bf16.msra.mxu0 %v1958
    %1991 = vmatmul.bf16.gmra.mxu0 %v1967
    %v1992 = vpop.f32.mrf.mxu0
    %v1993 = vadd.f32 0.0, %v1992
    %v1994 = vpop.f32.mrf.mxu0
    %v1995 = vadd.f32 0.0, %v1994
    %1996 = vdwg.mxu0
    %1997 = vmatpush.bf16.msra.mxu0 0
    %1998 = vmatpush.bf16.msra.mxu0 0
    %1999 = vmatpush.bf16.msra.mxu0 0
    %2000 = vmatpush.bf16.msra.mxu0 0
    %2001 = vmatpush.bf16.msra.mxu0 0
    %2002 = vmatpush.bf16.msra.mxu0 0
    %2003 = vmatpush.bf16.msra.mxu0 0
    %2004 = vmatpush.bf16.msra.mxu0 %v1959
    %2005 = vmatmul.bf16.gmra.mxu0 %v1967
    %v2006 = vpop.f32.mrf.mxu0
    %v2007 = vadd.f32 0.0, %v2006
    %v2008 = vpop.f32.mrf.mxu0
    %v2009 = vadd.f32 0.0, %v2008
    %2010 = vdwg.mxu0
    %2011 = vmatpush.bf16.msra.mxu0 0
    %2012 = vmatpush.bf16.msra.mxu0 0
    %2013 = vmatpush.bf16.msra.mxu0 0
    %2014 = vmatpush.bf16.msra.mxu0 0
    %2015 = vmatpush.bf16.msra.mxu0 0
    %2016 = vmatpush.bf16.msra.mxu0 0
    %2017 = vmatpush.bf16.msra.mxu0 0
    %2018 = vmatpush.bf16.msra.mxu0 %v1960
    %2019 = vmatmul.bf16.gmra.mxu0 %v1967
    %v2020 = vpop.f32.mrf.mxu0
    %v2021 = vadd.f32 0.0, %v2020
    %v2022 = vpop.f32.mrf.mxu0
    %v2023 = vadd.f32 0.0, %v2022
    %2024 = vdwg.mxu0
    %v2025 = vadd.f32 %v1914, %v1979
    %v2026 = vadd.f32 %v1915, %v1993
    %v2027 = vadd.f32 %v1916, %v2007
    %v2028 = vadd.f32 %v1917, %v2021
    %v2029 = vadd.f32 %v1918, %v1981
    %v2030 = vadd.f32 %v1919, %v1995
    %v2031 = vadd.f32 %v1920, %v2009
    %v2032 = vadd.f32 %v1921, %v2023
    %2033 = vrot.lane.b32.xlu0 %v1185, 111
    %v2034 = vpop.permute.xlu0 %2033
    %2035 = vrot.lane.b32.xlu0 %v1189, 111
    %v2036 = vpop.permute.xlu0 %2035
    %2037 = vrot.lane.b32.xlu0 %v1186, 111
    %v2038 = vpop.permute.xlu0 %2037
    %2039 = vrot.lane.b32.xlu0 %v1190, 111
    %v2040 = vpop.permute.xlu0 %2039
    %2041 = vrot.lane.b32.xlu0 %v1187, 111
    %v2042 = vpop.permute.xlu0 %2041
    %2043 = vrot.lane.b32.xlu0 %v1191, 111
    %v2044 = vpop.permute.xlu0 %2043
    %2045 = vrot.lane.b32.xlu0 %v1188, 111
    %v2046 = vpop.permute.xlu0 %2045
    %2047 = vrot.lane.b32.xlu0 %v1192, 111
    %v2048 = vpop.permute.xlu0 %2047
    %v2049 = vsel %vm970, %v2042, %v2046
    %v2050 = vsel %vm970, %v2044, %v2048
    %v2051 = vsel %vm970, %v2038, %v2042
    %v2052 = vsel %vm970, %v2040, %v2044
    %v2053 = vsel %vm970, %v2034, %v2038
    %v2054 = vsel %vm970, %v2036, %v2040
    %v2055 = vsel %vm970, %v2046, %v2034
    %v2056 = vsel %vm970, %v2048, %v2036
    %v2057 = vmul.f32 %v2053, %v978
    %v2058 = vmul.f32 %v2051, %v979
    %v2059 = vmul.f32 %v2049, %v980
    %v2060 = vmul.f32 %v2055, %v981
    %v2061 = vmul.f32 %v2054, %v978
    %v2062 = vmul.f32 %v2052, %v979
    %v2063 = vmul.f32 %v2050, %v980
    %v2064 = vmul.f32 %v2056, %v981
    %s2065 = scalar_lea.vmem %s5, 64
    %v2066 = vld [vmem:[%s2065] sm:$0xf]
    %v2067 = vld [vmem:[%s2065 + $0x4] sm:$0xf]
    %v2068 = vpack.c.bf16 %v2061, %v2057
    %v2069 = vpack.c.bf16 %v2062, %v2058
    %v2070 = vpack.c.bf16 %v2063, %v2059
    %v2071 = vpack.c.bf16 %v2064, %v2060
    %v2074 = vunpack.c.l.b16 %v2066
    %v2075 = vunpack.c.l.b16 %v2067
    %v2076 = vpack.c.b16 %v2075, %v2074
    %v2078 = vsel %vm1275, %v2076, 0
    %2080 = vmatpush.bf16.msra.mxu0 0
    %2081 = vmatpush.bf16.msra.mxu0 0
    %2082 = vmatpush.bf16.msra.mxu0 0
    %2083 = vmatpush.bf16.msra.mxu0 0
    %2084 = vmatpush.bf16.msra.mxu0 0
    %2085 = vmatpush.bf16.msra.mxu0 0
    %2086 = vmatpush.bf16.msra.mxu0 0
    %2087 = vmatpush.bf16.msra.mxu0 %v2068
    %2088 = vmatmul.bf16.gmra.mxu0 %v2078
    %v2089 = vpop.f32.mrf.mxu0
    %v2090 = vadd.f32 0.0, %v2089
    %v2091 = vpop.f32.mrf.mxu0
    %v2092 = vadd.f32 0.0, %v2091
    %2093 = vdwg.mxu0
    %2094 = vmatpush.bf16.msra.mxu0 0
    %2095 = vmatpush.bf16.msra.mxu0 0
    %2096 = vmatpush.bf16.msra.mxu0 0
    %2097 = vmatpush.bf16.msra.mxu0 0
    %2098 = vmatpush.bf16.msra.mxu0 0
    %2099 = vmatpush.bf16.msra.mxu0 0
    %2100 = vmatpush.bf16.msra.mxu0 0
    %2101 = vmatpush.bf16.msra.mxu0 %v2069
    %2102 = vmatmul.bf16.gmra.mxu0 %v2078
    %v2103 = vpop.f32.mrf.mxu0
    %v2104 = vadd.f32 0.0, %v2103
    %v2105 = vpop.f32.mrf.mxu0
    %v2106 = vadd.f32 0.0, %v2105
    %2107 = vdwg.mxu0
    %2108 = vmatpush.bf16.msra.mxu0 0
    %2109 = vmatpush.bf16.msra.mxu0 0
    %2110 = vmatpush.bf16.msra.mxu0 0
    %2111 = vmatpush.bf16.msra.mxu0 0
    %2112 = vmatpush.bf16.msra.mxu0 0
    %2113 = vmatpush.bf16.msra.mxu0 0
    %2114 = vmatpush.bf16.msra.mxu0 0
    %2115 = vmatpush.bf16.msra.mxu0 %v2070
    %2116 = vmatmul.bf16.gmra.mxu0 %v2078
    %v2117 = vpop.f32.mrf.mxu0
    %v2118 = vadd.f32 0.0, %v2117
    %v2119 = vpop.f32.mrf.mxu0
    %v2120 = vadd.f32 0.0, %v2119
    %2121 = vdwg.mxu0
    %2122 = vmatpush.bf16.msra.mxu0 0
    %2123 = vmatpush.bf16.msra.mxu0 0
    %2124 = vmatpush.bf16.msra.mxu0 0
    %2125 = vmatpush.bf16.msra.mxu0 0
    %2126 = vmatpush.bf16.msra.mxu0 0
    %2127 = vmatpush.bf16.msra.mxu0 0
    %2128 = vmatpush.bf16.msra.mxu0 0
    %2129 = vmatpush.bf16.msra.mxu0 %v2071
    %2130 = vmatmul.bf16.gmra.mxu0 %v2078
    %v2131 = vpop.f32.mrf.mxu0
    %v2132 = vadd.f32 0.0, %v2131
    %v2133 = vpop.f32.mrf.mxu0
    %v2134 = vadd.f32 0.0, %v2133
    %2135 = vdwg.mxu0
    %v2136 = vadd.f32 %v2025, %v2090
    %v2137 = vadd.f32 %v2026, %v2104
    %v2138 = vadd.f32 %v2027, %v2118
    %v2139 = vadd.f32 %v2028, %v2132
    %v2140 = vadd.f32 %v2029, %v2092
    %v2141 = vadd.f32 %v2030, %v2106
    %v2142 = vadd.f32 %v2031, %v2120
    %v2143 = vadd.f32 %v2032, %v2134
    %v2144 = vadd.f32 %v2136, %v2137
    %v2145 = vadd.f32 %v2144, %v2138
    %v2146 = vadd.f32 %v2145, %v2139
    %2147 = vadd.xlane.f32.xlu0 %v2146
    %v2148 = vpop.xlane.xlu0 %2147
    %v2149 = vadd.f32 %v2140, %v2141
    %v2150 = vadd.f32 %v2149, %v2142
    %v2151 = vadd.f32 %v2150, %v2143
    %2152 = vadd.xlane.f32.xlu0 %v2151
    %v2153 = vpop.xlane.xlu0 %2152
    %v2154 = vmul.f32 %v2136, %v2136
    %v2155 = vmul.f32 %v2137, %v2137
    %v2156 = vmul.f32 %v2138, %v2138
    %v2157 = vmul.f32 %v2139, %v2139
    %v2158 = vmul.f32 %v2140, %v2140
    %v2159 = vmul.f32 %v2141, %v2141
    %v2160 = vmul.f32 %v2142, %v2142
    %v2161 = vmul.f32 %v2143, %v2143
    %v2162 = vadd.f32 %v2154, %v2155
    %v2163 = vadd.f32 %v2162, %v2156
    %v2164 = vadd.f32 %v2163, %v2157
    %2165 = vadd.xlane.f32.xlu0 %v2164
    %v2166 = vpop.xlane.xlu0 %2165
    %v2167 = vadd.f32 %v2158, %v2159
    %v2168 = vadd.f32 %v2167, %v2160
    %v2169 = vadd.f32 %v2168, %v2161
    %2170 = vadd.xlane.f32.xlu0 %v2169
    %v2171 = vpop.xlane.xlu0 %2170
    %v2172 = vmul.f32 %v2148, 0.001953125
    %v2173 = vmul.f32 %v2153, 0.001953125
    %v2174 = vmul.f32 %v2166, 0.001953125
    %v2175 = vmul.f32 %v2171, 0.001953125
    %v2176 = vmul.f32 %v2172, %v2172
    %v2177 = vmul.f32 %v2173, %v2173
    %v2178 = vsub.f32 %v2174, %v2176
    %v2179 = vsub.f32 %v2175, %v2177
    %v2180 = vld [vmem:[%s6] sm:$0xff]
    %v2181 = vld [vmem:[%s6 + $0x8] sm:$0xff]
    %v2182 = vadd.f32 %v2178, 1e-05
    %v2183 = vadd.f32 %v2179, 1e-05
    %v2184 = vrsqrt.pop %v2182
    %v2185 = vmul.f32 %v2184, %v2182
    %v2186 = vmul.f32 %v2185, %v2184
    %v2187 = vmul.f32 0.5, %v2186
    %v2188 = vsub.f32 1.5, %v2187
    %v2189 = vmul.f32 %v2184, %v2188
    %vm2190 = vweird.f32 %v2182
    %vm2191 = vweird.f32 %v2184
    %vm2192 = vmor %vm2190, %vm2191
    %v2193 = vsel %vm2192, %v2184, %v2189
    %v2194 = vrsqrt.pop %v2183
    %v2195 = vmul.f32 %v2194, %v2183
    %v2196 = vmul.f32 %v2195, %v2194
    %v2197 = vmul.f32 0.5, %v2196
    %v2198 = vsub.f32 1.5, %v2197
    %v2199 = vmul.f32 %v2194, %v2198
    %vm2200 = vweird.f32 %v2183
    %vm2201 = vweird.f32 %v2194
    %vm2202 = vmor %vm2200, %vm2201
    %v2203 = vsel %vm2202, %v2194, %v2199
    %v2204 = vmul.f32 %v2180, %v2193
    %v2205 = vmul.f32 %v2181, %v2203
    %v2206 = vld [vmem:[%s7] sm:$0xff]
    %v2207 = vld [vmem:[%s7 + $0x8] sm:$0xff]
    %v2208 = vmul.f32 %v2172, %v2204
    %v2209 = vmul.f32 %v2173, %v2205
    %v2210 = vsub.f32 %v2206, %v2208
    %v2211 = vsub.f32 %v2207, %v2209
    %2213 = vset.pattern.permute.xlu0 0
    %2214 = vperm.xlu0 %2213, %v2204
    %v2215 = vpop.permute.xlu0 %2214
    %2218 = vset.pattern.permute.xlu0 0
    %2219 = vperm.xlu0 %2218, %v2205
    %v2220 = vpop.permute.xlu0 %2219
    %v2222 = vmul.f32 %v2136, %v2215
    %v2223 = vmul.f32 %v2137, %v2215
    %v2224 = vmul.f32 %v2138, %v2215
    %v2225 = vmul.f32 %v2139, %v2215
    %v2226 = vmul.f32 %v2140, %v2220
    %v2227 = vmul.f32 %v2141, %v2220
    %v2228 = vmul.f32 %v2142, %v2220
    %v2229 = vmul.f32 %v2143, %v2220
    %2231 = vset.pattern.permute.xlu0 0
    %2232 = vperm.xlu0 %2231, %v2210
    %v2233 = vpop.permute.xlu0 %2232
    %2236 = vset.pattern.permute.xlu0 0
    %2237 = vperm.xlu0 %2236, %v2211
    %v2238 = vpop.permute.xlu0 %2237
    %v2240 = vadd.f32 %v2222, %v2233
    %v2241 = vadd.f32 %v2223, %v2233
    %v2242 = vadd.f32 %v2224, %v2233
    %v2243 = vadd.f32 %v2225, %v2233
    %v2244 = vadd.f32 %v2226, %v2238
    %v2245 = vadd.f32 %v2227, %v2238
    %v2246 = vadd.f32 %v2228, %v2238
    %v2247 = vadd.f32 %v2229, %v2238
    %v2248 = vmax.f32 %v2240, 0.0
    %v2249 = vmax.f32 %v2241, 0.0
    %v2250 = vmax.f32 %v2242, 0.0
    %v2251 = vmax.f32 %v2243, 0.0
    %v2252 = vmax.f32 %v2244, 0.0
    %v2253 = vmax.f32 %v2245, 0.0
    %v2254 = vmax.f32 %v2246, 0.0
    %v2255 = vmax.f32 %v2247, 0.0
    %2256 = vst [vmem:[#allocation5] sm:$0xff] %v2248
    %2257 = vst [vmem:[#allocation5 + $0x8] sm:$0xff] %v2249
    %2258 = vst [vmem:[#allocation5 + $0x10] sm:$0xff] %v2252
    %2259 = vst [vmem:[#allocation5 + $0x18] sm:$0xff] %v2253
    %s2260 = scalar_lea.vmem [#allocation5], 32
    %2261 = vst [vmem:[%s2260] sm:$0xff] %v2250
    %2262 = vst [vmem:[%s2260 + $0x8] sm:$0xff] %v2251
    %2263 = vst [vmem:[%s2260 + $0x10] sm:$0xff] %v2254
    %2264 = vst [vmem:[%s2260 + $0x18] sm:$0xff] %v2255
    // Predicated region
    $region38: #{tpu_custom_call.1} parent=1 // pred_check
      _
    $region39: #{tpu_custom_call.1} parent=1 // pred_check_branch
      %2266 = sbr.rel (0) target = $region41
    $region40: #{tpu_custom_call.1} parent=1 // pred_region
      %2268 = vsyncadd [#allocation4], 0
      %s2269 = sshll.u32 [#allocation5], 4
      %s2270 = int_to_ptr.vmem [resolvable:$true] %s2269
      %s2271 = sshll.u32 %s8, 4
      %s2272 = int_to_ptr.hbm [resolvable:$true] %s2271
      %2277 = dma.vmem_to_hbm [thread:$0]  %s2270, 1024, %s2272, [#allocation4], 256, 256, 16
    $region41: #{tpu_custom_call.1} parent=1 // pred_fallthru
      _
    // Predicated region
    $region42: #{tpu_custom_call.1} parent=1 // pred_check
      _
    $region43: #{tpu_custom_call.1} parent=1 // pred_check_branch
      %2279 = sbr.rel (0) target = $region45
    $region44: #{tpu_custom_call.1} parent=1 // pred_region
      %2281 = dma.done [#allocation4], 1024
    $region45: #{tpu_custom_call.1} parent=1 // pred_fallthru
      _
    %2282 = vsyncpa [#allocation3], 1
    %2283 = vsyncpa [#allocation4], 1

</llo_original>
